<compile_context>
chip_gen: v5e
topology: v5e:2x2
jax: 0.10.0
libtpu: 0.0.40
codegen_flags: <defaults>
</compile_context>

<pallas_src>
import math

import numpy as np
import jax
import jax.numpy as jnp
from jax import lax
from jax.experimental import pallas as pl
from jax.experimental.pallas import tpu as pltpu

F32 = jnp.float32
BF16 = jnp.bfloat16


# ----------------------------- host-side helpers ------------------------------

def positional_encoding(t, dim):
    """Sinusoidal time embedding. t: (B,) -> (B, dim)."""
    t = t.astype(F32).reshape(-1, 1)
    half = dim // 2
    freqs = jnp.exp(-math.log(10000.0) * jnp.arange(half, dtype=F32) / half)
    args = t * freqs[None, :]
    return jnp.concatenate([jnp.sin(args), jnp.cos(args)], axis=-1)


class _Packer:
    """Packs many small 2-D host arrays row-wise into ONE padded 2-D buffer."""

    def __init__(self, row_align):
        self.row_align = row_align
        self.items = []
        self.off = 0

    def add(self, a):
        a = np.asarray(a, np.float32)
        r, c = a.shape
        rp = -(-r // self.row_align) * self.row_align       # sublane-aligned slot
        desc = (self.off, r, c)                             # static (offset, rows, cols)
        self.items.append((a, rp))
        self.off += rp
        return desc

    def finalize(self):
        width = -(-max(a.shape[1] for a, _ in self.items) // 128) * 128
        buf = np.zeros((self.off, width), np.float32)
        o = 0
        for a, rp in self.items:
            r, c = a.shape
            buf[o:o + r, :c] = a
            o += rp
        return buf


def _flat_conv_w(w):
    """(k, cin, cout) -> (cin, k*cout): taps laid out along columns [W0|W1|W2]."""
    k, cin, cout = w.shape
    return np.transpose(np.asarray(w, np.float32), (1, 0, 2)).reshape(cin, k * cout)


# ----------------------------------- model ------------------------------------

class UNetPallas:
    def __init__(self, channels=2, time_emb_dim=16, start_channels_base2=3,
                 n_layers=3, kernel_size_base2=1, n_groups=None, key=None):
        # TODO(synk): GroupNorm not implemented (reference default n_groups=None).
        assert n_groups is None
        del kernel_size_base2  # fixed k=3 'same' convs in this implementation
        self.channels = channels
        self.n_layers = n_layers
        self.time_emb_dim = time_emb_dim
        s = start_channels_base2

        if key is None:
            key = jax.random.PRNGKey(0)
        ki = iter(list(jax.random.split(key, 4 * n_layers + 8)))

        wp = _Packer(16)   # bf16 matmul weights: 16-row (packed sublane) aligned slots
        bp = _Packer(8)    # f32 biases:          8-row aligned slots

        def conv_block(cin, cout, kkey, split_at=None):
            ks = jax.random.split(kkey, 6)
            s1 = 1.0 / math.sqrt(3 * cin)
            s2 = 1.0 / math.sqrt(3 * cout)
            st = 1.0 / math.sqrt(time_emb_dim)
            w1 = s1 * np.asarray(jax.random.normal(ks[0], (3, cin, cout), F32))
            b1 = s1 * np.asarray(jax.random.normal(ks[1], (cout,), F32))
            wt = st * np.asarray(jax.random.normal(ks[2], (time_emb_dim, cout), F32))
            bt = st * np.asarray(jax.random.normal(ks[3], (cout,), F32))
            w2 = s2 * np.asarray(jax.random.normal(ks[4], (3, cout, cout), F32))
            b2 = s2 * np.asarray(jax.random.normal(ks[5], (cout,), F32))
            blk = {'cout': cout}
            if split_at is None:
                blk['w1'] = wp.add(_flat_conv_w(w1))
            else:
                # decode first conv: channel concat [x, skip] folded into 2 summed dots
                # TODO(synk): assumes torch concat order is [x, skip]; swap halves otherwise.
                blk['w1x'] = wp.add(_flat_conv_w(w1[:, :split_at, :]))
                blk['w1s'] = wp.add(_flat_conv_w(w1[:, split_at:, :]))
            blk['b1'] = bp.add((b1 + bt).reshape(1, cout))   # time-emb Linear bias folded in
            blk['wt'] = wp.add(wt)
            blk['w2'] = wp.add(_flat_conv_w(w2))
            blk['b2'] = bp.add(b2.reshape(1, cout))
            return blk

        def up_block(cin, cout, kkey):
            ks = jax.random.split(kkey, 2)
            su = 1.0 / math.sqrt(2 * cin)
            wu = su * np.asarray(jax.random.normal(ks[0], (2, cin, cout), F32))
            bu = su * np.asarray(jax.random.normal(ks[1], (cout,), F32))
            wu_all = np.transpose(wu, (1, 0, 2)).reshape(cin, 2 * cout)
            return {'wu': wp.add(wu_all), 'bu': bp.add(bu.reshape(1, cout)), 'cup': cout}

        # ---- encode path ----
        enc_cfg = [(channels, 2 ** s)]
        for i in range(1, n_layers - 1):
            enc_cfg.append((2 ** (s + i - 1), 2 ** (s + i)))
        self.enc_plan = [conv_block(ci, co, next(ki)) for (ci, co) in enc_cfg]

        # ---- bottom ----
        cb_in = 2 ** (s + n_layers - 2)
        bot = conv_block(cb_in, 2 * cb_in, next(ki))
        bot.update(up_block(2 * cb_in, cb_in, next(ki)))
        self.bottom_plan = bot

        # ---- decode path (runtime order: deepest -> shallowest) ----
        self.dec_plan = []
        for i in range(n_layers - 2, -1, -1):
            ch = 2 ** (s + i)
            blk = conv_block(2 * ch, ch, next(ki), split_at=ch)
            blk['up'] = up_block(ch, ch // 2, next(ki)) if i > 0 else None
            self.dec_plan.append(blk)

        # ---- final 1x1 conv ----
        c0 = 2 ** s
        kl = jax.random.split(next(ki), 2)
        wl = np.asarray(jax.random.normal(kl[0], (c0, channels), F32)) / math.sqrt(c0)
        bl = np.asarray(jax.random.normal(kl[1], (channels,), F32)) / math.sqrt(c0)
        self.last_plan = {'wl': wp.add(wl), 'bl': bp.add(bl.reshape(1, channels))}

        # ONE contiguous bf16 weight buffer + ONE small f32 bias buffer:
        # a single DMA each (instead of ~44 tiny transfers), pre-cast on host.
        self.wpack = jnp.asarray(wp.finalize(), dtype=BF16)
        self.bpack = jnp.asarray(bp.finalize(), dtype=F32)

    # ---------------------------------------------------------------------
    def _build_kernel(self, Bg, L0):
        enc_plan, bot = self.enc_plan, self.bottom_plan
        dec_plan, last = self.dec_plan, self.last_plan

        def kernel(x_ref, pe_ref, wp_ref, bp_ref, out_ref):
            def W(d):                               # static slice of the packed bf16 buffer
                off, r, c = d
                return wp_ref[off:off + r, :c]

            def Bv(d):                              # f32 bias row
                off, _, c = d
                return bp_ref[off:off + 1, :c]

            def lpos_of(R, Lk):
                ridx = lax.broadcasted_iota(jnp.int32, (R, 1), 0)
                if Lk & (Lk - 1) == 0:              # power of two: cheap AND
                    return jnp.bitwise_and(ridx, Lk - 1)
                return jnp.remainder(ridx, Lk)

            def conv3(parts, bdesc, cout, R, Lk, temb=None):
                """k=3 'same' Conv1d + bias (+ time-emb) + ReLU on (R, Cin) rows.
                Batch is folded into the rows (Lk rows per sample); the 3 taps are
                one dot per input tensor (skip concat folded in as a second dot)."""
                u = None
                for act, wdesc in parts:
                    dd = jnp.dot(act, W(wdesc), preferred_element_type=F32)
                    u = dd if u is None else u + dd
                u0, u1, u2 = u[:, :cout], u[:, cout:2 * cout], u[:, 2 * cout:]
                z = jnp.zeros((1, cout), F32)
                dn = jnp.concatenate([z, u0[:R - 1, :]], axis=0)    # x[l-1] @ W0
                up = jnp.concatenate([u2[1:, :], z], axis=0)        # x[l+1] @ W2
                if Lk < R:   # mask so taps don't leak across folded sample boundaries
                    lpos = lpos_of(R, Lk)
                    dn = jnp.where(lpos != 0, dn, 0.0)
                    up = jnp.where(lpos != Lk - 1, up, 0.0)
                y = dn + u1 + up + Bv(bdesc)
                if temb is not None:
                    y = y + temb
                return jnp.maximum(y, 0.0).astype(BF16)             # activations stay bf16

            def pool2(x, R):
                """MaxPool1d(k=2,s=2): sublane pair-max on the VPU (no matmuls)."""
                return jnp.max(x.reshape(R // 2, 2, x.shape[-1]), axis=1)

            def upconv2(x, wdesc, bdesc, cout, R):
                """ConvTranspose1d(k=2,s=2): one dot + sublane interleave (no scatter)."""
                zz = jnp.dot(x, W(wdesc), preferred_element_type=F32)   # (R, 2*cout)
                z0, z1 = zz[:, :cout], zz[:, cout:]
                y = jnp.concatenate([z0[:, None, :], z1[:, None, :]], axis=1)
                y = y.reshape(2 * R, cout) + Bv(bdesc)
                return y.astype(BF16)

            def temb_of(wdesc, pe_l):
                # time-embedding Linear applied to the row-broadcast pos-encoding
                return jnp.dot(pe_l, W(wdesc), preferred_element_type=F32)

            # ---- layout: (Bg, C, L0) NCL -> (Bg*L0, C) rows, bf16 (in-kernel transpose) ----
            xs = [x_ref[b].T for b in range(Bg)]
            h = (xs[0] if Bg == 1 else jnp.concatenate(xs, axis=0)).astype(BF16)
            pe_l = pe_ref[...]                                        # (Bg*L0, T) bf16

            R, Lk = Bg * L0, L0
            skips = []
            for blk in enc_plan:                                      # ---- encode ----
                co = blk['cout']
                h = conv3([(h, blk['w1'])], blk['b1'], co, R, Lk, temb_of(blk['wt'], pe_l))
                h = conv3([(h, blk['w2'])], blk['b2'], co, R, Lk)
                skips.append((h, pe_l))                               # bf16 skips stay resident
                h, pe_l = pool2(h, R), pool2(pe_l, R)
                R, Lk = R // 2, Lk // 2

            co = bot['cout']                                          # ---- bottom ----
            h = conv3([(h, bot['w1'])], bot['b1'], co, R, Lk, temb_of(bot['wt'], pe_l))
            h = conv3([(h, bot['w2'])], bot['b2'], co, R, Lk)
            h = upconv2(h, bot['wu'], bot['bu'], bot['cup'], R)
            R, Lk = 2 * R, 2 * Lk

            for lvl, blk in enumerate(dec_plan):                      # ---- decode ----
                skip, pe_s = skips[len(enc_plan) - 1 - lvl]
                co = blk['cout']
                h = conv3([(h, blk['w1x']), (skip, blk['w1s'])], blk['b1'], co, R, Lk,
                          temb_of(blk['wt'], pe_s))
                h = conv3([(h, blk['w2'])], blk['b2'], co, R, Lk)
                if blk['up'] is not None:
                    u = blk['up']
                    h = upconv2(h, u['wu'], u['bu'], u['cup'], R)
                    R, Lk = 2 * R, 2 * Lk

            # ---- final 1x1 conv (no ReLU); store lane-dense (Bg, C, L0) directly ----
            y = jnp.dot(h, W(last['wl']), preferred_element_type=F32) + Bv(last['bl'])
            for b in range(Bg):
                out_ref[b] = y[b * L0:(b + 1) * L0, :].T.astype(out_ref.dtype)

        return kernel

    # ---------------------------------------------------------------------
    def __call__(self, x_ncl, t, *, core_groups=1):
        """x_ncl: (B, C, L) like PyTorch Conv1d.  core_groups=1 folds the whole
        batch into one grid step (best on single-TC v5e/v6e); use core_groups=2
        on v7x to shard the batch across its two TensorCores."""
        B, C, L0 = x_ncl.shape
        assert C == self.channels
        assert L0 % (2 ** (self.n_layers - 1)) == 0
        G = core_groups if (core_groups >= 1 and B % core_groups == 0) else 1
        Bg = B // G
        T = self.time_emb_dim

        pe = positional_encoding(t, T)                                # (B, T)
        pe_rows = jnp.repeat(pe, L0, axis=0).astype(BF16)             # (B*L0, T) row-broadcast

        kernel = self._build_kernel(Bg, L0)
        wshape, bshape = self.wpack.shape, self.bpack.shape

        out = pl.pallas_call(
            kernel,
            out_shape=jax.ShapeDtypeStruct((B, C, L0), F32),
            grid=(G,),
            in_specs=[
                pl.BlockSpec((Bg, C, L0), lambda g: (g, 0, 0)),       # x, native NCL layout
                pl.BlockSpec((Bg * L0, T), lambda g: (g, 0)),         # pos-enc rows (bf16)
                pl.BlockSpec(wshape, lambda g: (0, 0)),               # ONE packed bf16 weight buf
                pl.BlockSpec(bshape, lambda g: (0, 0)),               # ONE packed f32 bias buf
            ],
            out_specs=pl.BlockSpec((Bg, C, L0), lambda g: (g, 0, 0)),
            compiler_params=pltpu.CompilerParams(
                dimension_semantics=("parallel",)),                   # v7x: core sharding
        )(x_ncl.astype(F32), pe_rows, self.wpack, self.bpack)
        return out                                                     # already (B, C, L)


if __name__ == "__main__":
    key = jax.random.PRNGKey(0)
    k_param, k_x, k_t = jax.random.split(key, 3)

    B, C, L = 2, 2, 16
    model = UNetPallas(channels=C, time_emb_dim=16, start_channels_base2=3,
                       n_layers=3, kernel_size_base2=1, n_groups=None, key=k_param)

    x = jax.random.normal(k_x, (B, C, L), dtype=F32)    # NCL, like torch
    t = jax.random.randint(k_t, (B,), 0, 1000)

    fwd = jax.jit(lambda xx, tt: model(xx, tt))
    y = jax.block_until_ready(fwd(x, t))
    assert y.shape == (B, C, L) and y.dtype == F32
    assert bool(jnp.all(jnp.isfinite(y)))
    print("KERNEL_OK")
</pallas_src>

<mosaic_0001>
module attributes {stable_mosaic.version = 11 : i64} {
  func.func @kernel(%arg0: i32, %arg1: memref<2x2x16xf32, #tpu.memory_space<vmem>>, %arg2: memref<32x16xbf16, #tpu.memory_space<vmem>>, %arg3: memref<352x128xbf16, #tpu.memory_space<vmem>>, %arg4: memref<104x128xf32, #tpu.memory_space<vmem>>, %arg5: memref<2x2x16xf32, #tpu.memory_space<vmem>>) attributes {dimension_semantics = [#tpu.dimension_semantics<parallel>], iteration_bounds = array<i64: 1>, scalar_prefetch = 0 : i64, scratch_operands = 0 : i64, tpu.core_type = #tpu.core_type<tc>, window_params = [{transform_indices = @transform_0, window_bounds = array<i64: 2, 2, 16>}, {transform_indices = @transform_1, window_bounds = array<i64: 32, 16>}, {pipeline_mode = #tpu.pipeline_mode<synchronous>, transform_indices = @transform_2, window_bounds = array<i64: 352, 128>}, {pipeline_mode = #tpu.pipeline_mode<synchronous>, transform_indices = @transform_3, window_bounds = array<i64: 104, 128>}, {transform_indices = @transform_4, window_bounds = array<i64: 2, 2, 16>}]} {
    %c0 = arith.constant 0 : index
    %c0_0 = arith.constant 0 : index
    %c0_1 = arith.constant 0 : index
    %0 = vector.load %arg1[%c0, %c0_0, %c0_1] : memref<2x2x16xf32, #tpu.memory_space<vmem>>, vector<1x2x16xf32>
    %1 = vector.shape_cast %0 : vector<1x2x16xf32> to vector<2x16xf32>
    %2 = tpu.transpose %1, [1, 0] : vector<2x16xf32> -> vector<16x2xf32>
    %c1 = arith.constant 1 : index
    %c0_2 = arith.constant 0 : index
    %c0_3 = arith.constant 0 : index
    %3 = vector.load %arg1[%c1, %c0_2, %c0_3] : memref<2x2x16xf32, #tpu.memory_space<vmem>>, vector<1x2x16xf32>
    %4 = vector.shape_cast %3 : vector<1x2x16xf32> to vector<2x16xf32>
    %5 = tpu.transpose %4, [1, 0] : vector<2x16xf32> -> vector<16x2xf32>
    %6 = tpu.concatenate %2, %5 in 0 : vector<16x2xf32>, vector<16x2xf32> -> vector<32x2xf32>
    %7 = arith.truncf %6 : vector<32x2xf32> to vector<32x2xbf16>
    %c0_4 = arith.constant 0 : index
    %c0_5 = arith.constant 0 : index
    %8 = vector.load %arg2[%c0_4, %c0_5] : memref<32x16xbf16, #tpu.memory_space<vmem>>, vector<32x16xbf16>
    %c16 = arith.constant 16 : index
    %c0_6 = arith.constant 0 : index
    %9 = vector.load %arg3[%c16, %c0_6] : memref<352x128xbf16, #tpu.memory_space<vmem>>, vector<16x8xbf16>
    %cst = arith.constant dense<0.000000e+00> : vector<32x8xf32>
    %10 = tpu.matmul %8, %9, %cst {dimension_numbers = #tpu.dot_dimension_numbers<[1], [0], [0], [1], [0, 0, 1, 1], [], []>} : vector<32x16xbf16>, vector<16x8xbf16>, vector<32x8xf32> -> vector<32x8xf32>
    %c0_7 = arith.constant 0 : index
    %c0_8 = arith.constant 0 : index
    %11 = vector.load %arg3[%c0_7, %c0_8] : memref<352x128xbf16, #tpu.memory_space<vmem>>, vector<2x24xbf16>
    %cst_9 = arith.constant dense<0.000000e+00> : vector<32x24xf32>
    %12 = tpu.matmul %7, %11, %cst_9 {dimension_numbers = #tpu.dot_dimension_numbers<[1], [0], [0], [1], [0, 0, 1, 1], [], []>} : vector<32x2xbf16>, vector<2x24xbf16>, vector<32x24xf32> -> vector<32x24xf32>
    %13 = vector.extract_strided_slice %12 {offsets = [0, 0], sizes = [32, 8], strides = [1, 1]} : vector<32x24xf32> to vector<32x8xf32>
    %14 = vector.extract_strided_slice %12 {offsets = [0, 8], sizes = [32, 8], strides = [1, 1]} : vector<32x24xf32> to vector<32x8xf32>
    %15 = vector.extract_strided_slice %12 {offsets = [0, 16], sizes = [32, 8], strides = [1, 1]} : vector<32x24xf32> to vector<32x8xf32>
    %cst_10 = arith.constant 0.000000e+00 : f32
    %16 = vector.broadcast %cst_10 : f32 to vector<1x8xf32>
    %17 = vector.extract_strided_slice %13 {offsets = [0, 0], sizes = [31, 8], strides = [1, 1]} : vector<32x8xf32> to vector<31x8xf32>
    %18 = tpu.concatenate %16, %17 in 0 : vector<1x8xf32>, vector<31x8xf32> -> vector<32x8xf32>
    %19 = vector.extract_strided_slice %15 {offsets = [1, 0], sizes = [31, 8], strides = [1, 1]} : vector<32x8xf32> to vector<31x8xf32>
    %20 = tpu.concatenate %19, %16 in 0 : vector<31x8xf32>, vector<1x8xf32> -> vector<32x8xf32>
    %21 = tpu.iota {dimensions = array<i32: 0>} : vector<32x1xi32>
    %c15_i32 = arith.constant 15 : i32
    %22 = vector.broadcast %c15_i32 : i32 to vector<32x1xi32>
    %23 = arith.andi %21, %22 : vector<32x1xi32>
    %c0_i32 = arith.constant 0 : i32
    %24 = vector.broadcast %c0_i32 : i32 to vector<32x1xi32>
    %25 = arith.cmpi ne, %23, %24 : vector<32x1xi32>
    %cst_11 = arith.constant 0.000000e+00 : f32
    %26 = vector.shape_cast %25 : vector<32x1xi1> to vector<32x1xi1>
    %27 = vector.broadcast %26 : vector<32x1xi1> to vector<32x8xi1>
    %28 = vector.broadcast %cst_11 : f32 to vector<32x8xf32>
    %29 = arith.select %27, %18, %28 : vector<32x8xi1>, vector<32x8xf32>
    %c15_i32_12 = arith.constant 15 : i32
    %30 = vector.broadcast %c15_i32_12 : i32 to vector<32x1xi32>
    %31 = arith.cmpi ne, %23, %30 : vector<32x1xi32>
    %cst_13 = arith.constant 0.000000e+00 : f32
    %32 = vector.shape_cast %31 : vector<32x1xi1> to vector<32x1xi1>
    %33 = vector.broadcast %32 : vector<32x1xi1> to vector<32x8xi1>
    %34 = vector.broadcast %cst_13 : f32 to vector<32x8xf32>
    %35 = arith.select %33, %20, %34 : vector<32x8xi1>, vector<32x8xf32>
    %36 = arith.addf %29, %14 : vector<32x8xf32>
    %37 = arith.addf %36, %35 : vector<32x8xf32>
    %c0_14 = arith.constant 0 : index
    %c0_15 = arith.constant 0 : index
    %38 = vector.load %arg4[%c0_14, %c0_15] : memref<104x128xf32, #tpu.memory_space<vmem>>, vector<1x8xf32>
    %39 = vector.broadcast %38 : vector<1x8xf32> to vector<32x8xf32>
    %40 = arith.addf %37, %39 : vector<32x8xf32>
    %41 = arith.addf %40, %10 : vector<32x8xf32>
    %cst_16 = arith.constant 0.000000e+00 : f32
    %42 = vector.broadcast %cst_16 : f32 to vector<32x8xf32>
    %43 = arith.maximumf %41, %42 : vector<32x8xf32>
    %44 = arith.truncf %43 : vector<32x8xf32> to vector<32x8xbf16>
    %c32 = arith.constant 32 : index
    %c0_17 = arith.constant 0 : index
    %45 = vector.load %arg3[%c32, %c0_17] : memref<352x128xbf16, #tpu.memory_space<vmem>>, vector<8x24xbf16>
    %cst_18 = arith.constant dense<0.000000e+00> : vector<32x24xf32>
    %46 = tpu.matmul %44, %45, %cst_18 {dimension_numbers = #tpu.dot_dimension_numbers<[1], [0], [0], [1], [0, 0, 1, 1], [], []>} : vector<32x8xbf16>, vector<8x24xbf16>, vector<32x24xf32> -> vector<32x24xf32>
    %47 = vector.extract_strided_slice %46 {offsets = [0, 0], sizes = [32, 8], strides = [1, 1]} : vector<32x24xf32> to vector<32x8xf32>
    %48 = vector.extract_strided_slice %46 {offsets = [0, 8], sizes = [32, 8], strides = [1, 1]} : vector<32x24xf32> to vector<32x8xf32>
    %49 = vector.extract_strided_slice %46 {offsets = [0, 16], sizes = [32, 8], strides = [1, 1]} : vector<32x24xf32> to vector<32x8xf32>
    %cst_19 = arith.constant 0.000000e+00 : f32
    %50 = vector.broadcast %cst_19 : f32 to vector<1x8xf32>
    %51 = vector.extract_strided_slice %47 {offsets = [0, 0], sizes = [31, 8], strides = [1, 1]} : vector<32x8xf32> to vector<31x8xf32>
    %52 = tpu.concatenate %50, %51 in 0 : vector<1x8xf32>, vector<31x8xf32> -> vector<32x8xf32>
    %53 = vector.extract_strided_slice %49 {offsets = [1, 0], sizes = [31, 8], strides = [1, 1]} : vector<32x8xf32> to vector<31x8xf32>
    %54 = tpu.concatenate %53, %50 in 0 : vector<31x8xf32>, vector<1x8xf32> -> vector<32x8xf32>
    %55 = tpu.iota {dimensions = array<i32: 0>} : vector<32x1xi32>
    %c15_i32_20 = arith.constant 15 : i32
    %56 = vector.broadcast %c15_i32_20 : i32 to vector<32x1xi32>
    %57 = arith.andi %55, %56 : vector<32x1xi32>
    %c0_i32_21 = arith.constant 0 : i32
    %58 = vector.broadcast %c0_i32_21 : i32 to vector<32x1xi32>
    %59 = arith.cmpi ne, %57, %58 : vector<32x1xi32>
    %cst_22 = arith.constant 0.000000e+00 : f32
    %60 = vector.shape_cast %59 : vector<32x1xi1> to vector<32x1xi1>
    %61 = vector.broadcast %60 : vector<32x1xi1> to vector<32x8xi1>
    %62 = vector.broadcast %cst_22 : f32 to vector<32x8xf32>
    %63 = arith.select %61, %52, %62 : vector<32x8xi1>, vector<32x8xf32>
    %c15_i32_23 = arith.constant 15 : i32
    %64 = vector.broadcast %c15_i32_23 : i32 to vector<32x1xi32>
    %65 = arith.cmpi ne, %57, %64 : vector<32x1xi32>
    %cst_24 = arith.constant 0.000000e+00 : f32
    %66 = vector.shape_cast %65 : vector<32x1xi1> to vector<32x1xi1>
    %67 = vector.broadcast %66 : vector<32x1xi1> to vector<32x8xi1>
    %68 = vector.broadcast %cst_24 : f32 to vector<32x8xf32>
    %69 = arith.select %67, %54, %68 : vector<32x8xi1>, vector<32x8xf32>
    %70 = arith.addf %63, %48 : vector<32x8xf32>
    %71 = arith.addf %70, %69 : vector<32x8xf32>
    %c8 = arith.constant 8 : index
    %c0_25 = arith.constant 0 : index
    %72 = vector.load %arg4[%c8, %c0_25] : memref<104x128xf32, #tpu.memory_space<vmem>>, vector<1x8xf32>
    %73 = vector.broadcast %72 : vector<1x8xf32> to vector<32x8xf32>
    %74 = arith.addf %71, %73 : vector<32x8xf32>
    %cst_26 = arith.constant 0.000000e+00 : f32
    %75 = vector.broadcast %cst_26 : f32 to vector<32x8xf32>
    %76 = arith.maximumf %74, %75 : vector<32x8xf32>
    %77 = arith.truncf %76 : vector<32x8xf32> to vector<32x8xbf16>
    %78 = vector.shape_cast %77 : vector<32x8xbf16> to vector<16x2x8xbf16>
    %cst_27 = arith.constant dense<0xFF80> : vector<16x8xbf16>
    %79 = vector.multi_reduction <maximumf>, %78, %cst_27 [1] : vector<16x2x8xbf16> to vector<16x8xbf16>
    %80 = vector.shape_cast %8 : vector<32x16xbf16> to vector<16x2x16xbf16>
    %cst_28 = arith.constant dense<0xFF80> : vector<16x16xbf16>
    %81 = vector.multi_reduction <maximumf>, %80, %cst_28 [1] : vector<16x2x16xbf16> to vector<16x16xbf16>
    %c64 = arith.constant 64 : index
    %c0_29 = arith.constant 0 : index
    %82 = vector.load %arg3[%c64, %c0_29] : memref<352x128xbf16, #tpu.memory_space<vmem>>, vector<16x16xbf16>
    %cst_30 = arith.constant dense<0.000000e+00> : vector<16x16xf32>
    %83 = tpu.matmul %81, %82, %cst_30 {dimension_numbers = #tpu.dot_dimension_numbers<[1], [0], [0], [1], [0, 0, 1, 1], [], []>} : vector<16x16xbf16>, vector<16x16xbf16>, vector<16x16xf32> -> vector<16x16xf32>
    %c48 = arith.constant 48 : index
    %c0_31 = arith.constant 0 : index
    %84 = vector.load %arg3[%c48, %c0_31] : memref<352x128xbf16, #tpu.memory_space<vmem>>, vector<8x48xbf16>
    %cst_32 = arith.constant dense<0.000000e+00> : vector<16x48xf32>
    %85 = tpu.matmul %79, %84, %cst_32 {dimension_numbers = #tpu.dot_dimension_numbers<[1], [0], [0], [1], [0, 0, 1, 1], [], []>} : vector<16x8xbf16>, vector<8x48xbf16>, vector<16x48xf32> -> vector<16x48xf32>
    %86 = vector.extract_strided_slice %85 {offsets = [0, 0], sizes = [16, 16], strides = [1, 1]} : vector<16x48xf32> to vector<16x16xf32>
    %87 = vector.extract_strided_slice %85 {offsets = [0, 16], sizes = [16, 16], strides = [1, 1]} : vector<16x48xf32> to vector<16x16xf32>
    %88 = vector.extract_strided_slice %85 {offsets = [0, 32], sizes = [16, 16], strides = [1, 1]} : vector<16x48xf32> to vector<16x16xf32>
    %cst_33 = arith.constant 0.000000e+00 : f32
    %89 = vector.broadcast %cst_33 : f32 to vector<1x16xf32>
    %90 = vector.extract_strided_slice %86 {offsets = [0, 0], sizes = [15, 16], strides = [1, 1]} : vector<16x16xf32> to vector<15x16xf32>
    %91 = tpu.concatenate %89, %90 in 0 : vector<1x16xf32>, vector<15x16xf32> -> vector<16x16xf32>
    %92 = vector.extract_strided_slice %88 {offsets = [1, 0], sizes = [15, 16], strides = [1, 1]} : vector<16x16xf32> to vector<15x16xf32>
    %93 = tpu.concatenate %92, %89 in 0 : vector<15x16xf32>, vector<1x16xf32> -> vector<16x16xf32>
    %94 = tpu.iota {dimensions = array<i32: 0>} : vector<16x1xi32>
    %c7_i32 = arith.constant 7 : i32
    %95 = vector.broadcast %c7_i32 : i32 to vector<16x1xi32>
    %96 = arith.andi %94, %95 : vector<16x1xi32>
    %c0_i32_34 = arith.constant 0 : i32
    %97 = vector.broadcast %c0_i32_34 : i32 to vector<16x1xi32>
    %98 = arith.cmpi ne, %96, %97 : vector<16x1xi32>
    %cst_35 = arith.constant 0.000000e+00 : f32
    %99 = vector.shape_cast %98 : vector<16x1xi1> to vector<16x1xi1>
    %100 = vector.broadcast %99 : vector<16x1xi1> to vector<16x16xi1>
    %101 = vector.broadcast %cst_35 : f32 to vector<16x16xf32>
    %102 = arith.select %100, %91, %101 : vector<16x16xi1>, vector<16x16xf32>
    %c7_i32_36 = arith.constant 7 : i32
    %103 = vector.broadcast %c7_i32_36 : i32 to vector<16x1xi32>
    %104 = arith.cmpi ne, %96, %103 : vector<16x1xi32>
    %cst_37 = arith.constant 0.000000e+00 : f32
    %105 = vector.shape_cast %104 : vector<16x1xi1> to vector<16x1xi1>
    %106 = vector.broadcast %105 : vector<16x1xi1> to vector<16x16xi1>
    %107 = vector.broadcast %cst_37 : f32 to vector<16x16xf32>
    %108 = arith.select %106, %93, %107 : vector<16x16xi1>, vector<16x16xf32>
    %109 = arith.addf %102, %87 : vector<16x16xf32>
    %110 = arith.addf %109, %108 : vector<16x16xf32>
    %c16_38 = arith.constant 16 : index
    %c0_39 = arith.constant 0 : index
    %111 = vector.load %arg4[%c16_38, %c0_39] : memref<104x128xf32, #tpu.memory_space<vmem>>, vector<1x16xf32>
    %112 = vector.broadcast %111 : vector<1x16xf32> to vector<16x16xf32>
    %113 = arith.addf %110, %112 : vector<16x16xf32>
    %114 = arith.addf %113, %83 : vector<16x16xf32>
    %cst_40 = arith.constant 0.000000e+00 : f32
    %115 = vector.broadcast %cst_40 : f32 to vector<16x16xf32>
    %116 = arith.maximumf %114, %115 : vector<16x16xf32>
    %117 = arith.truncf %116 : vector<16x16xf32> to vector<16x16xbf16>
    %c80 = arith.constant 80 : index
    %c0_41 = arith.constant 0 : index
    %118 = vector.load %arg3[%c80, %c0_41] : memref<352x128xbf16, #tpu.memory_space<vmem>>, vector<16x48xbf16>
    %cst_42 = arith.constant dense<0.000000e+00> : vector<16x48xf32>
    %119 = tpu.matmul %117, %118, %cst_42 {dimension_numbers = #tpu.dot_dimension_numbers<[1], [0], [0], [1], [0, 0, 1, 1], [], []>} : vector<16x16xbf16>, vector<16x48xbf16>, vector<16x48xf32> -> vector<16x48xf32>
    %120 = vector.extract_strided_slice %119 {offsets = [0, 0], sizes = [16, 16], strides = [1, 1]} : vector<16x48xf32> to vector<16x16xf32>
    %121 = vector.extract_strided_slice %119 {offsets = [0, 16], sizes = [16, 16], strides = [1, 1]} : vector<16x48xf32> to vector<16x16xf32>
    %122 = vector.extract_strided_slice %119 {offsets = [0, 32], sizes = [16, 16], strides = [1, 1]} : vector<16x48xf32> to vector<16x16xf32>
    %cst_43 = arith.constant 0.000000e+00 : f32
    %123 = vector.broadcast %cst_43 : f32 to vector<1x16xf32>
    %124 = vector.extract_strided_slice %120 {offsets = [0, 0], sizes = [15, 16], strides = [1, 1]} : vector<16x16xf32> to vector<15x16xf32>
    %125 = tpu.concatenate %123, %124 in 0 : vector<1x16xf32>, vector<15x16xf32> -> vector<16x16xf32>
    %126 = vector.extract_strided_slice %122 {offsets = [1, 0], sizes = [15, 16], strides = [1, 1]} : vector<16x16xf32> to vector<15x16xf32>
    %127 = tpu.concatenate %126, %123 in 0 : vector<15x16xf32>, vector<1x16xf32> -> vector<16x16xf32>
    %128 = tpu.iota {dimensions = array<i32: 0>} : vector<16x1xi32>
    %c7_i32_44 = arith.constant 7 : i32
    %129 = vector.broadcast %c7_i32_44 : i32 to vector<16x1xi32>
    %130 = arith.andi %128, %129 : vector<16x1xi32>
    %c0_i32_45 = arith.constant 0 : i32
    %131 = vector.broadcast %c0_i32_45 : i32 to vector<16x1xi32>
    %132 = arith.cmpi ne, %130, %131 : vector<16x1xi32>
    %cst_46 = arith.constant 0.000000e+00 : f32
    %133 = vector.shape_cast %132 : vector<16x1xi1> to vector<16x1xi1>
    %134 = vector.broadcast %133 : vector<16x1xi1> to vector<16x16xi1>
    %135 = vector.broadcast %cst_46 : f32 to vector<16x16xf32>
    %136 = arith.select %134, %125, %135 : vector<16x16xi1>, vector<16x16xf32>
    %c7_i32_47 = arith.constant 7 : i32
    %137 = vector.broadcast %c7_i32_47 : i32 to vector<16x1xi32>
    %138 = arith.cmpi ne, %130, %137 : vector<16x1xi32>
    %cst_48 = arith.constant 0.000000e+00 : f32
    %139 = vector.shape_cast %138 : vector<16x1xi1> to vector<16x1xi1>
    %140 = vector.broadcast %139 : vector<16x1xi1> to vector<16x16xi1>
    %141 = vector.broadcast %cst_48 : f32 to vector<16x16xf32>
    %142 = arith.select %140, %127, %141 : vector<16x16xi1>, vector<16x16xf32>
    %143 = arith.addf %136, %121 : vector<16x16xf32>
    %144 = arith.addf %143, %142 : vector<16x16xf32>
    %c24 = arith.constant 24 : index
    %c0_49 = arith.constant 0 : index
    %145 = vector.load %arg4[%c24, %c0_49] : memref<104x128xf32, #tpu.memory_space<vmem>>, vector<1x16xf32>
    %146 = vector.broadcast %145 : vector<1x16xf32> to vector<16x16xf32>
    %147 = arith.addf %144, %146 : vector<16x16xf32>
    %cst_50 = arith.constant 0.000000e+00 : f32
    %148 = vector.broadcast %cst_50 : f32 to vector<16x16xf32>
    %149 = arith.maximumf %147, %148 : vector<16x16xf32>
    %150 = arith.truncf %149 : vector<16x16xf32> to vector<16x16xbf16>
    %151 = vector.shape_cast %150 : vector<16x16xbf16> to vector<8x2x16xbf16>
    %cst_51 = arith.constant dense<0xFF80> : vector<8x16xbf16>
    %152 = vector.multi_reduction <maximumf>, %151, %cst_51 [1] : vector<8x2x16xbf16> to vector<8x16xbf16>
    %153 = vector.shape_cast %81 : vector<16x16xbf16> to vector<8x2x16xbf16>
    %cst_52 = arith.constant dense<0xFF80> : vector<8x16xbf16>
    %154 = vector.multi_reduction <maximumf>, %153, %cst_52 [1] : vector<8x2x16xbf16> to vector<8x16xbf16>
    %c112 = arith.constant 112 : index
    %c0_53 = arith.constant 0 : index
    %155 = vector.load %arg3[%c112, %c0_53] : memref<352x128xbf16, #tpu.memory_space<vmem>>, vector<16x32xbf16>
    %cst_54 = arith.constant dense<0.000000e+00> : vector<8x32xf32>
    %156 = tpu.matmul %154, %155, %cst_54 {dimension_numbers = #tpu.dot_dimension_numbers<[1], [0], [0], [1], [0, 0, 1, 1], [], []>} : vector<8x16xbf16>, vector<16x32xbf16>, vector<8x32xf32> -> vector<8x32xf32>
    %c96 = arith.constant 96 : index
    %c0_55 = arith.constant 0 : index
    %157 = vector.load %arg3[%c96, %c0_55] : memref<352x128xbf16, #tpu.memory_space<vmem>>, vector<16x96xbf16>
    %cst_56 = arith.constant dense<0.000000e+00> : vector<8x96xf32>
    %158 = tpu.matmul %152, %157, %cst_56 {dimension_numbers = #tpu.dot_dimension_numbers<[1], [0], [0], [1], [0, 0, 1, 1], [], []>} : vector<8x16xbf16>, vector<16x96xbf16>, vector<8x96xf32> -> vector<8x96xf32>
    %159 = vector.extract_strided_slice %158 {offsets = [0, 0], sizes = [8, 32], strides = [1, 1]} : vector<8x96xf32> to vector<8x32xf32>
    %160 = vector.extract_strided_slice %158 {offsets = [0, 32], sizes = [8, 32], strides = [1, 1]} : vector<8x96xf32> to vector<8x32xf32>
    %161 = vector.extract_strided_slice %158 {offsets = [0, 64], sizes = [8, 32], strides = [1, 1]} : vector<8x96xf32> to vector<8x32xf32>
    %cst_57 = arith.constant 0.000000e+00 : f32
    %162 = vector.broadcast %cst_57 : f32 to vector<1x32xf32>
    %163 = vector.extract_strided_slice %159 {offsets = [0, 0], sizes = [7, 32], strides = [1, 1]} : vector<8x32xf32> to vector<7x32xf32>
    %164 = tpu.concatenate %162, %163 in 0 : vector<1x32xf32>, vector<7x32xf32> -> vector<8x32xf32>
    %165 = vector.extract_strided_slice %161 {offsets = [1, 0], sizes = [7, 32], strides = [1, 1]} : vector<8x32xf32> to vector<7x32xf32>
    %166 = tpu.concatenate %165, %162 in 0 : vector<7x32xf32>, vector<1x32xf32> -> vector<8x32xf32>
    %167 = tpu.iota {dimensions = array<i32: 0>} : vector<8x1xi32>
    %c3_i32 = arith.constant 3 : i32
    %168 = vector.broadcast %c3_i32 : i32 to vector<8x1xi32>
    %169 = arith.andi %167, %168 : vector<8x1xi32>
    %c0_i32_58 = arith.constant 0 : i32
    %170 = vector.broadcast %c0_i32_58 : i32 to vector<8x1xi32>
    %171 = arith.cmpi ne, %169, %170 : vector<8x1xi32>
    %cst_59 = arith.constant 0.000000e+00 : f32
    %172 = vector.shape_cast %171 : vector<8x1xi1> to vector<8x1xi1>
    %173 = vector.broadcast %172 : vector<8x1xi1> to vector<8x32xi1>
    %174 = vector.broadcast %cst_59 : f32 to vector<8x32xf32>
    %175 = arith.select %173, %164, %174 : vector<8x32xi1>, vector<8x32xf32>
    %c3_i32_60 = arith.constant 3 : i32
    %176 = vector.broadcast %c3_i32_60 : i32 to vector<8x1xi32>
    %177 = arith.cmpi ne, %169, %176 : vector<8x1xi32>
    %cst_61 = arith.constant 0.000000e+00 : f32
    %178 = vector.shape_cast %177 : vector<8x1xi1> to vector<8x1xi1>
    %179 = vector.broadcast %178 : vector<8x1xi1> to vector<8x32xi1>
    %180 = vector.broadcast %cst_61 : f32 to vector<8x32xf32>
    %181 = arith.select %179, %166, %180 : vector<8x32xi1>, vector<8x32xf32>
    %182 = arith.addf %175, %160 : vector<8x32xf32>
    %183 = arith.addf %182, %181 : vector<8x32xf32>
    %c32_62 = arith.constant 32 : index
    %c0_63 = arith.constant 0 : index
    %184 = vector.load %arg4[%c32_62, %c0_63] : memref<104x128xf32, #tpu.memory_space<vmem>>, vector<1x32xf32>
    %185 = vector.broadcast %184 : vector<1x32xf32> to vector<8x32xf32>
    %186 = arith.addf %183, %185 : vector<8x32xf32>
    %187 = arith.addf %186, %156 : vector<8x32xf32>
    %cst_64 = arith.constant 0.000000e+00 : f32
    %188 = vector.broadcast %cst_64 : f32 to vector<8x32xf32>
    %189 = arith.maximumf %187, %188 : vector<8x32xf32>
    %190 = arith.truncf %189 : vector<8x32xf32> to vector<8x32xbf16>
    %c128 = arith.constant 128 : index
    %c0_65 = arith.constant 0 : index
    %191 = vector.load %arg3[%c128, %c0_65] : memref<352x128xbf16, #tpu.memory_space<vmem>>, vector<32x96xbf16>
    %cst_66 = arith.constant dense<0.000000e+00> : vector<8x96xf32>
    %192 = tpu.matmul %190, %191, %cst_66 {dimension_numbers = #tpu.dot_dimension_numbers<[1], [0], [0], [1], [0, 0, 1, 1], [], []>} : vector<8x32xbf16>, vector<32x96xbf16>, vector<8x96xf32> -> vector<8x96xf32>
    %193 = vector.extract_strided_slice %192 {offsets = [0, 0], sizes = [8, 32], strides = [1, 1]} : vector<8x96xf32> to vector<8x32xf32>
    %194 = vector.extract_strided_slice %192 {offsets = [0, 32], sizes = [8, 32], strides = [1, 1]} : vector<8x96xf32> to vector<8x32xf32>
    %195 = vector.extract_strided_slice %192 {offsets = [0, 64], sizes = [8, 32], strides = [1, 1]} : vector<8x96xf32> to vector<8x32xf32>
    %cst_67 = arith.constant 0.000000e+00 : f32
    %196 = vector.broadcast %cst_67 : f32 to vector<1x32xf32>
    %197 = vector.extract_strided_slice %193 {offsets = [0, 0], sizes = [7, 32], strides = [1, 1]} : vector<8x32xf32> to vector<7x32xf32>
    %198 = tpu.concatenate %196, %197 in 0 : vector<1x32xf32>, vector<7x32xf32> -> vector<8x32xf32>
    %199 = vector.extract_strided_slice %195 {offsets = [1, 0], sizes = [7, 32], strides = [1, 1]} : vector<8x32xf32> to vector<7x32xf32>
    %200 = tpu.concatenate %199, %196 in 0 : vector<7x32xf32>, vector<1x32xf32> -> vector<8x32xf32>
    %201 = tpu.iota {dimensions = array<i32: 0>} : vector<8x1xi32>
    %c3_i32_68 = arith.constant 3 : i32
    %202 = vector.broadcast %c3_i32_68 : i32 to vector<8x1xi32>
    %203 = arith.andi %201, %202 : vector<8x1xi32>
    %c0_i32_69 = arith.constant 0 : i32
    %204 = vector.broadcast %c0_i32_69 : i32 to vector<8x1xi32>
    %205 = arith.cmpi ne, %203, %204 : vector<8x1xi32>
    %cst_70 = arith.constant 0.000000e+00 : f32
    %206 = vector.shape_cast %205 : vector<8x1xi1> to vector<8x1xi1>
    %207 = vector.broadcast %206 : vector<8x1xi1> to vector<8x32xi1>
    %208 = vector.broadcast %cst_70 : f32 to vector<8x32xf32>
    %209 = arith.select %207, %198, %208 : vector<8x32xi1>, vector<8x32xf32>
    %c3_i32_71 = arith.constant 3 : i32
    %210 = vector.broadcast %c3_i32_71 : i32 to vector<8x1xi32>
    %211 = arith.cmpi ne, %203, %210 : vector<8x1xi32>
    %cst_72 = arith.constant 0.000000e+00 : f32
    %212 = vector.shape_cast %211 : vector<8x1xi1> to vector<8x1xi1>
    %213 = vector.broadcast %212 : vector<8x1xi1> to vector<8x32xi1>
    %214 = vector.broadcast %cst_72 : f32 to vector<8x32xf32>
    %215 = arith.select %213, %200, %214 : vector<8x32xi1>, vector<8x32xf32>
    %216 = arith.addf %209, %194 : vector<8x32xf32>
    %217 = arith.addf %216, %215 : vector<8x32xf32>
    %c40 = arith.constant 40 : index
    %c0_73 = arith.constant 0 : index
    %218 = vector.load %arg4[%c40, %c0_73] : memref<104x128xf32, #tpu.memory_space<vmem>>, vector<1x32xf32>
    %219 = vector.broadcast %218 : vector<1x32xf32> to vector<8x32xf32>
    %220 = arith.addf %217, %219 : vector<8x32xf32>
    %cst_74 = arith.constant 0.000000e+00 : f32
    %221 = vector.broadcast %cst_74 : f32 to vector<8x32xf32>
    %222 = arith.maximumf %220, %221 : vector<8x32xf32>
    %223 = arith.truncf %222 : vector<8x32xf32> to vector<8x32xbf16>
    %c160 = arith.constant 160 : index
    %c0_75 = arith.constant 0 : index
    %224 = vector.load %arg3[%c160, %c0_75] : memref<352x128xbf16, #tpu.memory_space<vmem>>, vector<32x32xbf16>
    %cst_76 = arith.constant dense<0.000000e+00> : vector<8x32xf32>
    %225 = tpu.matmul %223, %224, %cst_76 {dimension_numbers = #tpu.dot_dimension_numbers<[1], [0], [0], [1], [0, 0, 1, 1], [], []>} : vector<8x32xbf16>, vector<32x32xbf16>, vector<8x32xf32> -> vector<8x32xf32>
    %226 = vector.extract_strided_slice %225 {offsets = [0, 0], sizes = [8, 16], strides = [1, 1]} : vector<8x32xf32> to vector<8x16xf32>
    %227 = vector.extract_strided_slice %225 {offsets = [0, 16], sizes = [8, 16], strides = [1, 1]} : vector<8x32xf32> to vector<8x16xf32>
    %228 = vector.shape_cast %226 : vector<8x16xf32> to vector<8x1x16xf32>
    %229 = vector.shape_cast %227 : vector<8x16xf32> to vector<8x1x16xf32>
    %230 = tpu.concatenate %228, %229 in 1 : vector<8x1x16xf32>, vector<8x1x16xf32> -> vector<8x2x16xf32>
    %231 = vector.shape_cast %230 : vector<8x2x16xf32> to vector<16x16xf32>
    %c48_77 = arith.constant 48 : index
    %c0_78 = arith.constant 0 : index
    %232 = vector.load %arg4[%c48_77, %c0_78] : memref<104x128xf32, #tpu.memory_space<vmem>>, vector<1x16xf32>
    %233 = vector.broadcast %232 : vector<1x16xf32> to vector<16x16xf32>
    %234 = arith.addf %231, %233 : vector<16x16xf32>
    %235 = arith.truncf %234 : vector<16x16xf32> to vector<16x16xbf16>
    %c224 = arith.constant 224 : index
    %c0_79 = arith.constant 0 : index
    %236 = vector.load %arg3[%c224, %c0_79] : memref<352x128xbf16, #tpu.memory_space<vmem>>, vector<16x16xbf16>
    %cst_80 = arith.constant dense<0.000000e+00> : vector<16x16xf32>
    %237 = tpu.matmul %81, %236, %cst_80 {dimension_numbers = #tpu.dot_dimension_numbers<[1], [0], [0], [1], [0, 0, 1, 1], [], []>} : vector<16x16xbf16>, vector<16x16xbf16>, vector<16x16xf32> -> vector<16x16xf32>
    %c192 = arith.constant 192 : index
    %c0_81 = arith.constant 0 : index
    %238 = vector.load %arg3[%c192, %c0_81] : memref<352x128xbf16, #tpu.memory_space<vmem>>, vector<16x48xbf16>
    %cst_82 = arith.constant dense<0.000000e+00> : vector<16x48xf32>
    %239 = tpu.matmul %235, %238, %cst_82 {dimension_numbers = #tpu.dot_dimension_numbers<[1], [0], [0], [1], [0, 0, 1, 1], [], []>} : vector<16x16xbf16>, vector<16x48xbf16>, vector<16x48xf32> -> vector<16x48xf32>
    %c208 = arith.constant 208 : index
    %c0_83 = arith.constant 0 : index
    %240 = vector.load %arg3[%c208, %c0_83] : memref<352x128xbf16, #tpu.memory_space<vmem>>, vector<16x48xbf16>
    %cst_84 = arith.constant dense<0.000000e+00> : vector<16x48xf32>
    %241 = tpu.matmul %150, %240, %cst_84 {dimension_numbers = #tpu.dot_dimension_numbers<[1], [0], [0], [1], [0, 0, 1, 1], [], []>} : vector<16x16xbf16>, vector<16x48xbf16>, vector<16x48xf32> -> vector<16x48xf32>
    %242 = arith.addf %239, %241 : vector<16x48xf32>
    %243 = vector.extract_strided_slice %242 {offsets = [0, 0], sizes = [16, 16], strides = [1, 1]} : vector<16x48xf32> to vector<16x16xf32>
    %244 = vector.extract_strided_slice %242 {offsets = [0, 16], sizes = [16, 16], strides = [1, 1]} : vector<16x48xf32> to vector<16x16xf32>
    %245 = vector.extract_strided_slice %242 {offsets = [0, 32], sizes = [16, 16], strides = [1, 1]} : vector<16x48xf32> to vector<16x16xf32>
    %cst_85 = arith.constant 0.000000e+00 : f32
    %246 = vector.broadcast %cst_85 : f32 to vector<1x16xf32>
    %247 = vector.extract_strided_slice %243 {offsets = [0, 0], sizes = [15, 16], strides = [1, 1]} : vector<16x16xf32> to vector<15x16xf32>
    %248 = tpu.concatenate %246, %247 in 0 : vector<1x16xf32>, vector<15x16xf32> -> vector<16x16xf32>
    %249 = vector.extract_strided_slice %245 {offsets = [1, 0], sizes = [15, 16], strides = [1, 1]} : vector<16x16xf32> to vector<15x16xf32>
    %250 = tpu.concatenate %249, %246 in 0 : vector<15x16xf32>, vector<1x16xf32> -> vector<16x16xf32>
    %251 = tpu.iota {dimensions = array<i32: 0>} : vector<16x1xi32>
    %c7_i32_86 = arith.constant 7 : i32
    %252 = vector.broadcast %c7_i32_86 : i32 to vector<16x1xi32>
    %253 = arith.andi %251, %252 : vector<16x1xi32>
    %c0_i32_87 = arith.constant 0 : i32
    %254 = vector.broadcast %c0_i32_87 : i32 to vector<16x1xi32>
    %255 = arith.cmpi ne, %253, %254 : vector<16x1xi32>
    %cst_88 = arith.constant 0.000000e+00 : f32
    %256 = vector.shape_cast %255 : vector<16x1xi1> to vector<16x1xi1>
    %257 = vector.broadcast %256 : vector<16x1xi1> to vector<16x16xi1>
    %258 = vector.broadcast %cst_88 : f32 to vector<16x16xf32>
    %259 = arith.select %257, %248, %258 : vector<16x16xi1>, vector<16x16xf32>
    %c7_i32_89 = arith.constant 7 : i32
    %260 = vector.broadcast %c7_i32_89 : i32 to vector<16x1xi32>
    %261 = arith.cmpi ne, %253, %260 : vector<16x1xi32>
    %cst_90 = arith.constant 0.000000e+00 : f32
    %262 = vector.shape_cast %261 : vector<16x1xi1> to vector<16x1xi1>
    %263 = vector.broadcast %262 : vector<16x1xi1> to vector<16x16xi1>
    %264 = vector.broadcast %cst_90 : f32 to vector<16x16xf32>
    %265 = arith.select %263, %250, %264 : vector<16x16xi1>, vector<16x16xf32>
    %266 = arith.addf %259, %244 : vector<16x16xf32>
    %267 = arith.addf %266, %265 : vector<16x16xf32>
    %c56 = arith.constant 56 : index
    %c0_91 = arith.constant 0 : index
    %268 = vector.load %arg4[%c56, %c0_91] : memref<104x128xf32, #tpu.memory_space<vmem>>, vector<1x16xf32>
    %269 = vector.broadcast %268 : vector<1x16xf32> to vector<16x16xf32>
    %270 = arith.addf %267, %269 : vector<16x16xf32>
    %271 = arith.addf %270, %237 : vector<16x16xf32>
    %cst_92 = arith.constant 0.000000e+00 : f32
    %272 = vector.broadcast %cst_92 : f32 to vector<16x16xf32>
    %273 = arith.maximumf %271, %272 : vector<16x16xf32>
    %274 = arith.truncf %273 : vector<16x16xf32> to vector<16x16xbf16>
    %c240 = arith.constant 240 : index
    %c0_93 = arith.constant 0 : index
    %275 = vector.load %arg3[%c240, %c0_93] : memref<352x128xbf16, #tpu.memory_space<vmem>>, vector<16x48xbf16>
    %cst_94 = arith.constant dense<0.000000e+00> : vector<16x48xf32>
    %276 = tpu.matmul %274, %275, %cst_94 {dimension_numbers = #tpu.dot_dimension_numbers<[1], [0], [0], [1], [0, 0, 1, 1], [], []>} : vector<16x16xbf16>, vector<16x48xbf16>, vector<16x48xf32> -> vector<16x48xf32>
    %277 = vector.extract_strided_slice %276 {offsets = [0, 0], sizes = [16, 16], strides = [1, 1]} : vector<16x48xf32> to vector<16x16xf32>
    %278 = vector.extract_strided_slice %276 {offsets = [0, 16], sizes = [16, 16], strides = [1, 1]} : vector<16x48xf32> to vector<16x16xf32>
    %279 = vector.extract_strided_slice %276 {offsets = [0, 32], sizes = [16, 16], strides = [1, 1]} : vector<16x48xf32> to vector<16x16xf32>
    %cst_95 = arith.constant 0.000000e+00 : f32
    %280 = vector.broadcast %cst_95 : f32 to vector<1x16xf32>
    %281 = vector.extract_strided_slice %277 {offsets = [0, 0], sizes = [15, 16], strides = [1, 1]} : vector<16x16xf32> to vector<15x16xf32>
    %282 = tpu.concatenate %280, %281 in 0 : vector<1x16xf32>, vector<15x16xf32> -> vector<16x16xf32>
    %283 = vector.extract_strided_slice %279 {offsets = [1, 0], sizes = [15, 16], strides = [1, 1]} : vector<16x16xf32> to vector<15x16xf32>
    %284 = tpu.concatenate %283, %280 in 0 : vector<15x16xf32>, vector<1x16xf32> -> vector<16x16xf32>
    %285 = tpu.iota {dimensions = array<i32: 0>} : vector<16x1xi32>
    %c7_i32_96 = arith.constant 7 : i32
    %286 = vector.broadcast %c7_i32_96 : i32 to vector<16x1xi32>
    %287 = arith.andi %285, %286 : vector<16x1xi32>
    %c0_i32_97 = arith.constant 0 : i32
    %288 = vector.broadcast %c0_i32_97 : i32 to vector<16x1xi32>
    %289 = arith.cmpi ne, %287, %288 : vector<16x1xi32>
    %cst_98 = arith.constant 0.000000e+00 : f32
    %290 = vector.shape_cast %289 : vector<16x1xi1> to vector<16x1xi1>
    %291 = vector.broadcast %290 : vector<16x1xi1> to vector<16x16xi1>
    %292 = vector.broadcast %cst_98 : f32 to vector<16x16xf32>
    %293 = arith.select %291, %282, %292 : vector<16x16xi1>, vector<16x16xf32>
    %c7_i32_99 = arith.constant 7 : i32
    %294 = vector.broadcast %c7_i32_99 : i32 to vector<16x1xi32>
    %295 = arith.cmpi ne, %287, %294 : vector<16x1xi32>
    %cst_100 = arith.constant 0.000000e+00 : f32
    %296 = vector.shape_cast %295 : vector<16x1xi1> to vector<16x1xi1>
    %297 = vector.broadcast %296 : vector<16x1xi1> to vector<16x16xi1>
    %298 = vector.broadcast %cst_100 : f32 to vector<16x16xf32>
    %299 = arith.select %297, %284, %298 : vector<16x16xi1>, vector<16x16xf32>
    %300 = arith.addf %293, %278 : vector<16x16xf32>
    %301 = arith.addf %300, %299 : vector<16x16xf32>
    %c64_101 = arith.constant 64 : index
    %c0_102 = arith.constant 0 : index
    %302 = vector.load %arg4[%c64_101, %c0_102] : memref<104x128xf32, #tpu.memory_space<vmem>>, vector<1x16xf32>
    %303 = vector.broadcast %302 : vector<1x16xf32> to vector<16x16xf32>
    %304 = arith.addf %301, %303 : vector<16x16xf32>
    %cst_103 = arith.constant 0.000000e+00 : f32
    %305 = vector.broadcast %cst_103 : f32 to vector<16x16xf32>
    %306 = arith.maximumf %304, %305 : vector<16x16xf32>
    %307 = arith.truncf %306 : vector<16x16xf32> to vector<16x16xbf16>
    %c256 = arith.constant 256 : index
    %c0_104 = arith.constant 0 : index
    %308 = vector.load %arg3[%c256, %c0_104] : memref<352x128xbf16, #tpu.memory_space<vmem>>, vector<16x16xbf16>
    %cst_105 = arith.constant dense<0.000000e+00> : vector<16x16xf32>
    %309 = tpu.matmul %307, %308, %cst_105 {dimension_numbers = #tpu.dot_dimension_numbers<[1], [0], [0], [1], [0, 0, 1, 1], [], []>} : vector<16x16xbf16>, vector<16x16xbf16>, vector<16x16xf32> -> vector<16x16xf32>
    %310 = vector.extract_strided_slice %309 {offsets = [0, 0], sizes = [16, 8], strides = [1, 1]} : vector<16x16xf32> to vector<16x8xf32>
    %311 = vector.extract_strided_slice %309 {offsets = [0, 8], sizes = [16, 8], strides = [1, 1]} : vector<16x16xf32> to vector<16x8xf32>
    %312 = vector.shape_cast %310 : vector<16x8xf32> to vector<16x1x8xf32>
    %313 = vector.shape_cast %311 : vector<16x8xf32> to vector<16x1x8xf32>
    %314 = tpu.concatenate %312, %313 in 1 : vector<16x1x8xf32>, vector<16x1x8xf32> -> vector<16x2x8xf32>
    %315 = vector.shape_cast %314 : vector<16x2x8xf32> to vector<32x8xf32>
    %c72 = arith.constant 72 : index
    %c0_106 = arith.constant 0 : index
    %316 = vector.load %arg4[%c72, %c0_106] : memref<104x128xf32, #tpu.memory_space<vmem>>, vector<1x8xf32>
    %317 = vector.broadcast %316 : vector<1x8xf32> to vector<32x8xf32>
    %318 = arith.addf %315, %317 : vector<32x8xf32>
    %319 = arith.truncf %318 : vector<32x8xf32> to vector<32x8xbf16>
    %c304 = arith.constant 304 : index
    %c0_107 = arith.constant 0 : index
    %320 = vector.load %arg3[%c304, %c0_107] : memref<352x128xbf16, #tpu.memory_space<vmem>>, vector<16x8xbf16>
    %cst_108 = arith.constant dense<0.000000e+00> : vector<32x8xf32>
    %321 = tpu.matmul %8, %320, %cst_108 {dimension_numbers = #tpu.dot_dimension_numbers<[1], [0], [0], [1], [0, 0, 1, 1], [], []>} : vector<32x16xbf16>, vector<16x8xbf16>, vector<32x8xf32> -> vector<32x8xf32>
    %c272 = arith.constant 272 : index
    %c0_109 = arith.constant 0 : index
    %322 = vector.load %arg3[%c272, %c0_109] : memref<352x128xbf16, #tpu.memory_space<vmem>>, vector<8x24xbf16>
    %cst_110 = arith.constant dense<0.000000e+00> : vector<32x24xf32>
    %323 = tpu.matmul %319, %322, %cst_110 {dimension_numbers = #tpu.dot_dimension_numbers<[1], [0], [0], [1], [0, 0, 1, 1], [], []>} : vector<32x8xbf16>, vector<8x24xbf16>, vector<32x24xf32> -> vector<32x24xf32>
    %c288 = arith.constant 288 : index
    %c0_111 = arith.constant 0 : index
    %324 = vector.load %arg3[%c288, %c0_111] : memref<352x128xbf16, #tpu.memory_space<vmem>>, vector<8x24xbf16>
    %cst_112 = arith.constant dense<0.000000e+00> : vector<32x24xf32>
    %325 = tpu.matmul %77, %324, %cst_112 {dimension_numbers = #tpu.dot_dimension_numbers<[1], [0], [0], [1], [0, 0, 1, 1], [], []>} : vector<32x8xbf16>, vector<8x24xbf16>, vector<32x24xf32> -> vector<32x24xf32>
    %326 = arith.addf %323, %325 : vector<32x24xf32>
    %327 = vector.extract_strided_slice %326 {offsets = [0, 0], sizes = [32, 8], strides = [1, 1]} : vector<32x24xf32> to vector<32x8xf32>
    %328 = vector.extract_strided_slice %326 {offsets = [0, 8], sizes = [32, 8], strides = [1, 1]} : vector<32x24xf32> to vector<32x8xf32>
    %329 = vector.extract_strided_slice %326 {offsets = [0, 16], sizes = [32, 8], strides = [1, 1]} : vector<32x24xf32> to vector<32x8xf32>
    %cst_113 = arith.constant 0.000000e+00 : f32
    %330 = vector.broadcast %cst_113 : f32 to vector<1x8xf32>
    %331 = vector.extract_strided_slice %327 {offsets = [0, 0], sizes = [31, 8], strides = [1, 1]} : vector<32x8xf32> to vector<31x8xf32>
    %332 = tpu.concatenate %330, %331 in 0 : vector<1x8xf32>, vector<31x8xf32> -> vector<32x8xf32>
    %333 = vector.extract_strided_slice %329 {offsets = [1, 0], sizes = [31, 8], strides = [1, 1]} : vector<32x8xf32> to vector<31x8xf32>
    %334 = tpu.concatenate %333, %330 in 0 : vector<31x8xf32>, vector<1x8xf32> -> vector<32x8xf32>
    %335 = tpu.iota {dimensions = array<i32: 0>} : vector<32x1xi32>
    %c15_i32_114 = arith.constant 15 : i32
    %336 = vector.broadcast %c15_i32_114 : i32 to vector<32x1xi32>
    %337 = arith.andi %335, %336 : vector<32x1xi32>
    %c0_i32_115 = arith.constant 0 : i32
    %338 = vector.broadcast %c0_i32_115 : i32 to vector<32x1xi32>
    %339 = arith.cmpi ne, %337, %338 : vector<32x1xi32>
    %cst_116 = arith.constant 0.000000e+00 : f32
    %340 = vector.shape_cast %339 : vector<32x1xi1> to vector<32x1xi1>
    %341 = vector.broadcast %340 : vector<32x1xi1> to vector<32x8xi1>
    %342 = vector.broadcast %cst_116 : f32 to vector<32x8xf32>
    %343 = arith.select %341, %332, %342 : vector<32x8xi1>, vector<32x8xf32>
    %c15_i32_117 = arith.constant 15 : i32
    %344 = vector.broadcast %c15_i32_117 : i32 to vector<32x1xi32>
    %345 = arith.cmpi ne, %337, %344 : vector<32x1xi32>
    %cst_118 = arith.constant 0.000000e+00 : f32
    %346 = vector.shape_cast %345 : vector<32x1xi1> to vector<32x1xi1>
    %347 = vector.broadcast %346 : vector<32x1xi1> to vector<32x8xi1>
    %348 = vector.broadcast %cst_118 : f32 to vector<32x8xf32>
    %349 = arith.select %347, %334, %348 : vector<32x8xi1>, vector<32x8xf32>
    %350 = arith.addf %343, %328 : vector<32x8xf32>
    %351 = arith.addf %350, %349 : vector<32x8xf32>
    %c80_119 = arith.constant 80 : index
    %c0_120 = arith.constant 0 : index
    %352 = vector.load %arg4[%c80_119, %c0_120] : memref<104x128xf32, #tpu.memory_space<vmem>>, vector<1x8xf32>
    %353 = vector.broadcast %352 : vector<1x8xf32> to vector<32x8xf32>
    %354 = arith.addf %351, %353 : vector<32x8xf32>
    %355 = arith.addf %354, %321 : vector<32x8xf32>
    %cst_121 = arith.constant 0.000000e+00 : f32
    %356 = vector.broadcast %cst_121 : f32 to vector<32x8xf32>
    %357 = arith.maximumf %355, %356 : vector<32x8xf32>
    %358 = arith.truncf %357 : vector<32x8xf32> to vector<32x8xbf16>
    %c320 = arith.constant 320 : index
    %c0_122 = arith.constant 0 : index
    %359 = vector.load %arg3[%c320, %c0_122] : memref<352x128xbf16, #tpu.memory_space<vmem>>, vector<8x24xbf16>
    %cst_123 = arith.constant dense<0.000000e+00> : vector<32x24xf32>
    %360 = tpu.matmul %358, %359, %cst_123 {dimension_numbers = #tpu.dot_dimension_numbers<[1], [0], [0], [1], [0, 0, 1, 1], [], []>} : vector<32x8xbf16>, vector<8x24xbf16>, vector<32x24xf32> -> vector<32x24xf32>
    %361 = vector.extract_strided_slice %360 {offsets = [0, 0], sizes = [32, 8], strides = [1, 1]} : vector<32x24xf32> to vector<32x8xf32>
    %362 = vector.extract_strided_slice %360 {offsets = [0, 8], sizes = [32, 8], strides = [1, 1]} : vector<32x24xf32> to vector<32x8xf32>
    %363 = vector.extract_strided_slice %360 {offsets = [0, 16], sizes = [32, 8], strides = [1, 1]} : vector<32x24xf32> to vector<32x8xf32>
    %cst_124 = arith.constant 0.000000e+00 : f32
    %364 = vector.broadcast %cst_124 : f32 to vector<1x8xf32>
    %365 = vector.extract_strided_slice %361 {offsets = [0, 0], sizes = [31, 8], strides = [1, 1]} : vector<32x8xf32> to vector<31x8xf32>
    %366 = tpu.concatenate %364, %365 in 0 : vector<1x8xf32>, vector<31x8xf32> -> vector<32x8xf32>
    %367 = vector.extract_strided_slice %363 {offsets = [1, 0], sizes = [31, 8], strides = [1, 1]} : vector<32x8xf32> to vector<31x8xf32>
    %368 = tpu.concatenate %367, %364 in 0 : vector<31x8xf32>, vector<1x8xf32> -> vector<32x8xf32>
    %369 = tpu.iota {dimensions = array<i32: 0>} : vector<32x1xi32>
    %c15_i32_125 = arith.constant 15 : i32
    %370 = vector.broadcast %c15_i32_125 : i32 to vector<32x1xi32>
    %371 = arith.andi %369, %370 : vector<32x1xi32>
    %c0_i32_126 = arith.constant 0 : i32
    %372 = vector.broadcast %c0_i32_126 : i32 to vector<32x1xi32>
    %373 = arith.cmpi ne, %371, %372 : vector<32x1xi32>
    %cst_127 = arith.constant 0.000000e+00 : f32
    %374 = vector.shape_cast %373 : vector<32x1xi1> to vector<32x1xi1>
    %375 = vector.broadcast %374 : vector<32x1xi1> to vector<32x8xi1>
    %376 = vector.broadcast %cst_127 : f32 to vector<32x8xf32>
    %377 = arith.select %375, %366, %376 : vector<32x8xi1>, vector<32x8xf32>
    %c15_i32_128 = arith.constant 15 : i32
    %378 = vector.broadcast %c15_i32_128 : i32 to vector<32x1xi32>
    %379 = arith.cmpi ne, %371, %378 : vector<32x1xi32>
    %cst_129 = arith.constant 0.000000e+00 : f32
    %380 = vector.shape_cast %379 : vector<32x1xi1> to vector<32x1xi1>
    %381 = vector.broadcast %380 : vector<32x1xi1> to vector<32x8xi1>
    %382 = vector.broadcast %cst_129 : f32 to vector<32x8xf32>
    %383 = arith.select %381, %368, %382 : vector<32x8xi1>, vector<32x8xf32>
    %384 = arith.addf %377, %362 : vector<32x8xf32>
    %385 = arith.addf %384, %383 : vector<32x8xf32>
    %c88 = arith.constant 88 : index
    %c0_130 = arith.constant 0 : index
    %386 = vector.load %arg4[%c88, %c0_130] : memref<104x128xf32, #tpu.memory_space<vmem>>, vector<1x8xf32>
    %387 = vector.broadcast %386 : vector<1x8xf32> to vector<32x8xf32>
    %388 = arith.addf %385, %387 : vector<32x8xf32>
    %cst_131 = arith.constant 0.000000e+00 : f32
    %389 = vector.broadcast %cst_131 : f32 to vector<32x8xf32>
    %390 = arith.maximumf %388, %389 : vector<32x8xf32>
    %391 = arith.truncf %390 : vector<32x8xf32> to vector<32x8xbf16>
    %c336 = arith.constant 336 : index
    %c0_132 = arith.constant 0 : index
    %392 = vector.load %arg3[%c336, %c0_132] : memref<352x128xbf16, #tpu.memory_space<vmem>>, vector<8x2xbf16>
    %cst_133 = arith.constant dense<0.000000e+00> : vector<32x2xf32>
    %393 = tpu.matmul %391, %392, %cst_133 {dimension_numbers = #tpu.dot_dimension_numbers<[1], [0], [0], [1], [0, 0, 1, 1], [], []>} : vector<32x8xbf16>, vector<8x2xbf16>, vector<32x2xf32> -> vector<32x2xf32>
    %c96_134 = arith.constant 96 : index
    %c0_135 = arith.constant 0 : index
    %394 = vector.load %arg4[%c96_134, %c0_135] : memref<104x128xf32, #tpu.memory_space<vmem>>, vector<1x2xf32>
    %395 = vector.broadcast %394 : vector<1x2xf32> to vector<32x2xf32>
    %396 = arith.addf %393, %395 : vector<32x2xf32>
    %397 = vector.extract_strided_slice %396 {offsets = [0, 0], sizes = [16, 2], strides = [1, 1]} : vector<32x2xf32> to vector<16x2xf32>
    %398 = tpu.transpose %397, [1, 0] : vector<16x2xf32> -> vector<2x16xf32>
    %c0_136 = arith.constant 0 : index
    %c0_137 = arith.constant 0 : index
    %c0_138 = arith.constant 0 : index
    %399 = vector.load %arg5[%c0_136, %c0_137, %c0_138] : memref<2x2x16xf32, #tpu.memory_space<vmem>>, vector<1x2x16xf32>
    %400 = vector.shape_cast %399 : vector<1x2x16xf32> to vector<2x16xf32>
    %401 = vector.shape_cast %398 : vector<2x16xf32> to vector<1x2x16xf32>
    tpu.vector_store %arg5[%c0_136, %c0_137, %c0_138], %401 {strides = array<i32>} : memref<2x2x16xf32, #tpu.memory_space<vmem>>, vector<1x2x16xf32>,
    %402 = vector.extract_strided_slice %396 {offsets = [16, 0], sizes = [16, 2], strides = [1, 1]} : vector<32x2xf32> to vector<16x2xf32>
    %403 = tpu.transpose %402, [1, 0] : vector<16x2xf32> -> vector<2x16xf32>
    %c1_139 = arith.constant 1 : index
    %c0_140 = arith.constant 0 : index
    %c0_141 = arith.constant 0 : index
    %404 = vector.load %arg5[%c1_139, %c0_140, %c0_141] : memref<2x2x16xf32, #tpu.memory_space<vmem>>, vector<1x2x16xf32>
    %405 = vector.shape_cast %404 : vector<1x2x16xf32> to vector<2x16xf32>
    %406 = vector.shape_cast %403 : vector<2x16xf32> to vector<1x2x16xf32>
    tpu.vector_store %arg5[%c1_139, %c0_140, %c0_141], %406 {strides = array<i32>} : memref<2x2x16xf32, #tpu.memory_space<vmem>>, vector<1x2x16xf32>,
    return
  }
  func.func @transform_0(%arg0: i32) -> (i32, i32, i32) {
    %c0_i32 = arith.constant 0 : i32
    %c0_i32_0 = arith.constant 0 : i32
    %c0_i32_1 = arith.constant 0 : i32
    return %arg0, %c0_i32, %c0_i32_0 : i32, i32, i32
  }
  func.func @transform_1(%arg0: i32) -> (i32, i32) {
    %c0_i32 = arith.constant 0 : i32
    %c0_i32_0 = arith.constant 0 : i32
    return %arg0, %c0_i32 : i32, i32
  }
  func.func @transform_2(%arg0: i32) -> (i32, i32) {
    %c0_i32 = arith.constant 0 : i32
    %c0_i32_0 = arith.constant 0 : i32
    %c0_i32_1 = arith.constant 0 : i32
    return %c0_i32, %c0_i32_0 : i32, i32
  }
  func.func @transform_3(%arg0: i32) -> (i32, i32) {
    %c0_i32 = arith.constant 0 : i32
    %c0_i32_0 = arith.constant 0 : i32
    %c0_i32_1 = arith.constant 0 : i32
    return %c0_i32, %c0_i32_0 : i32, i32
  }
  func.func @transform_4(%arg0: i32) -> (i32, i32, i32) {
    %c0_i32 = arith.constant 0 : i32
    %c0_i32_0 = arith.constant 0 : i32
    %c0_i32_1 = arith.constant 0 : i32
    return %arg0, %c0_i32, %c0_i32_0 : i32, i32, i32
  }
}

</mosaic_0001>

<llo_original>
// kernel: _lambda_.1
$region0: #{_lambda_.1}
  #allocation0 [shape = 'u32[]', space=smem, size = 0x4, offset = 0x4, fixed_abs, tag = 'smem constant byte address 0x4 - core index']
  #allocation1 [shape = 'u32[72,128]{1,0:T(1,128)}', space=vmem, size = 0x9000, scoped, tag = 'internal scratch']
  %s0 = inlined_call_operand.vmem [shape: f32[2,2,16], index: 0, kind: input, shape index: {}]
  %s1 = inlined_call_operand.vmem [shape: bf16[32,16], index: 1, kind: input, shape index: {}]
  %s2 = inlined_call_operand.hbm [shape: bf16[352,128], index: 2, kind: input, shape index: {}]
  %s3 = inlined_call_operand.hbm [shape: f32[104,128], index: 3, kind: input, shape index: {}]
  %s4 = inlined_call_operand.hbm [shape: f32[2,2,16], index: 4, kind: output, shape index: {}]
  %s5 = sld [smem:[#allocation0]]
  $region34: #{_lambda_.1} parent=0
    _
  %s7 = ssub.s32 1, %s5
  %s8 = scalar_select 0, %s7, %s5
  $region1: #{_lambda_.1} parent=0
    #allocation2 [shape = 'u8[90112]{0}', space=vmem, size = 0x16000, scoped, tag = 'input window, operand 2, single buffered']
    #allocation3 [shape = 's32[1]{0}', space=sflag, size = 0x4, scoped, tag = 'scoped memory for _lambda_.1']
    #allocation4 [shape = 's32[1]{0}', space=sflag, size = 0x4, scoped, tag = 'scoped memory for _lambda_.1']
    #allocation5 [shape = 'u8[53248]{0}', space=vmem, size = 0xd000, scoped, tag = 'input window, operand 3, single buffered']
    #allocation6 [shape = 's32[1]{0}', space=sflag, size = 0x4, scoped, tag = 'scoped memory for _lambda_.1']
    #allocation7 [shape = 'u8[2048]{0}', space=vmem, size = 0x800, scoped, tag = 'output window, operand 0, single buffered']
    %9 = vsyncpa [#allocation3], 0
    %10 = vsyncpa [#allocation6], 0
    %11 = vsyncpa [#allocation4], 0
    // Predicated region
    $region2: #{_lambda_.1} parent=1 // pred_check
      _
    $region3: #{_lambda_.1} parent=1 // pred_check_branch
      %13 = sbr.rel (0) target = $region5
    $region4: #{_lambda_.1} parent=1 // pred_region
      _
    $region5: #{_lambda_.1} parent=1 // pred_fallthru
      _
    // Predicated region
    $region6: #{_lambda_.1} parent=1 // pred_check
      _
    $region7: #{_lambda_.1} parent=1 // pred_check_branch
      %15 = sbr.rel (0) target = $region9
    $region8: #{_lambda_.1} parent=1 // pred_region
      _
    $region9: #{_lambda_.1} parent=1 // pred_fallthru
      _
    // Predicated region
    $region10: #{_lambda_.1} parent=1 // pred_check
      _
    $region11: #{_lambda_.1} parent=1 // pred_check_branch
      %17 = sbr.rel (0) target = $region13
    $region12: #{_lambda_.1} parent=1 // pred_region
      %19 = vsyncadd [#allocation3], 0
      %s20 = sshll.u32 %s2, 4
      %s21 = int_to_ptr.hbm [resolvable:$true] %s20
      %s22 = sshll.u32 [#allocation2], 4
      %s23 = int_to_ptr.vmem [resolvable:$true] %s22
      %28 = dma.hbm_to_vmem [thread:$0]  %s21, 2816, %s23, [#allocation3], 64, 64, 4
    $region13: #{_lambda_.1} parent=1 // pred_fallthru
      _
    // Predicated region
    $region14: #{_lambda_.1} parent=1 // pred_check
      _
    $region15: #{_lambda_.1} parent=1 // pred_check_branch
      %30 = sbr.rel (0) target = $region17
    $region16: #{_lambda_.1} parent=1 // pred_region
      %32 = vsyncadd [#allocation6], 0
      %s33 = sshll.u32 %s3, 4
      %s34 = int_to_ptr.hbm [resolvable:$true] %s33
      %s35 = sshll.u32 [#allocation5], 4
      %s36 = int_to_ptr.vmem [resolvable:$true] %s35
      %41 = dma.hbm_to_vmem [thread:$0]  %s34, 1664, %s36, [#allocation6], 128, 128, 8
    $region17: #{_lambda_.1} parent=1 // pred_fallthru
      _
    // Predicated region
    $region18: #{_lambda_.1} parent=1 // pred_check
      _
    $region19: #{_lambda_.1} parent=1 // pred_check_branch
      %43 = sbr.rel (0) target = $region21
    $region20: #{_lambda_.1} parent=1 // pred_region
      %45 = dma.done [#allocation3], 2816
    $region21: #{_lambda_.1} parent=1 // pred_fallthru
      _
    // Predicated region
    $region22: #{_lambda_.1} parent=1 // pred_check
      _
    $region23: #{_lambda_.1} parent=1 // pred_check_branch
      %47 = sbr.rel (0) target = $region25
    $region24: #{_lambda_.1} parent=1 // pred_region
      %49 = dma.done [#allocation6], 1664
    $region25: #{_lambda_.1} parent=1 // pred_fallthru
      _
    %v51 = vld [vmem:[%s0] sm:$0x3]
    %52 = vxpose.xlu0.b32.start [1/16] %v51, 128
    %53 = vxpose.xlu0.b32.cont [2/16] 0.0, 128
    %54 = vxpose.xlu0.b32.cont [3/16] 0.0, 128
    %55 = vxpose.xlu0.b32.cont [4/16] 0.0, 128
    %56 = vxpose.xlu0.b32.cont [5/16] 0.0, 128
    %57 = vxpose.xlu0.b32.cont [6/16] 0.0, 128
    %58 = vxpose.xlu0.b32.cont [7/16] 0.0, 128
    %59 = vxpose.xlu0.b32.cont [8/16] 0.0, 128
    %60 = vxpose.xlu0.b32.cont [9/16] 0.0, 128
    %61 = vxpose.xlu0.b32.cont [10/16] 0.0, 128
    %62 = vxpose.xlu0.b32.cont [11/16] 0.0, 128
    %63 = vxpose.xlu0.b32.cont [12/16] 0.0, 128
    %64 = vxpose.xlu0.b32.cont [13/16] 0.0, 128
    %65 = vxpose.xlu0.b32.cont [14/16] 0.0, 128
    %66 = vxpose.xlu0.b32.cont [15/16] 0.0, 128
    %67 = vxpose.xlu0.b32.end [16/16] 0.0, 128
    %v68 = vpop.trf.xlu0
    %v69 = vpop.trf.xlu0
    %v70 = vpop.trf.xlu0
    %v71 = vpop.trf.xlu0
    %v72 = vpop.trf.xlu0
    %v73 = vpop.trf.xlu0
    %v74 = vpop.trf.xlu0
    %v75 = vpop.trf.xlu0
    %v76 = vpop.trf.xlu0
    %v77 = vpop.trf.xlu0
    %v78 = vpop.trf.xlu0
    %v79 = vpop.trf.xlu0
    %v80 = vpop.trf.xlu0
    %v81 = vpop.trf.xlu0
    %v82 = vpop.trf.xlu0
    %v83 = vpop.trf.xlu0
    %s84 = scalar_lea.vmem %s0, 2
    %v85 = vld [vmem:[%s84] sm:$0x3]
    %86 = vxpose.xlu0.b32.start [1/16] %v85, 128
    %87 = vxpose.xlu0.b32.cont [2/16] 0.0, 128
    %88 = vxpose.xlu0.b32.cont [3/16] 0.0, 128
    %89 = vxpose.xlu0.b32.cont [4/16] 0.0, 128
    %90 = vxpose.xlu0.b32.cont [5/16] 0.0, 128
    %91 = vxpose.xlu0.b32.cont [6/16] 0.0, 128
    %92 = vxpose.xlu0.b32.cont [7/16] 0.0, 128
    %93 = vxpose.xlu0.b32.cont [8/16] 0.0, 128
    %94 = vxpose.xlu0.b32.cont [9/16] 0.0, 128
    %95 = vxpose.xlu0.b32.cont [10/16] 0.0, 128
    %96 = vxpose.xlu0.b32.cont [11/16] 0.0, 128
    %97 = vxpose.xlu0.b32.cont [12/16] 0.0, 128
    %98 = vxpose.xlu0.b32.cont [13/16] 0.0, 128
    %99 = vxpose.xlu0.b32.cont [14/16] 0.0, 128
    %100 = vxpose.xlu0.b32.cont [15/16] 0.0, 128
    %101 = vxpose.xlu0.b32.end [16/16] 0.0, 128
    %v102 = vpop.trf.xlu0
    %v103 = vpop.trf.xlu0
    %v104 = vpop.trf.xlu0
    %v105 = vpop.trf.xlu0
    %v106 = vpop.trf.xlu0
    %v107 = vpop.trf.xlu0
    %v108 = vpop.trf.xlu0
    %v109 = vpop.trf.xlu0
    %v110 = vpop.trf.xlu0
    %v111 = vpop.trf.xlu0
    %v112 = vpop.trf.xlu0
    %v113 = vpop.trf.xlu0
    %v114 = vpop.trf.xlu0
    %v115 = vpop.trf.xlu0
    %v116 = vpop.trf.xlu0
    %v117 = vpop.trf.xlu0
    %v118 = vpack.c.bf16 %v69, %v68
    %v119 = vpack.c.bf16 %v103, %v102
    %v120 = vld [vmem:[%s1] sm:$0xf]
    %v121 = vld [vmem:[%s1 + $0x4] sm:$0xf]
    %v122 = vld [vmem:[%s1 + $0x8] sm:$0xf]
    %v123 = vld [vmem:[%s1 + $0xc] sm:$0xf]
    %v124 = vld [vmem:[#allocation2 + $0x8] sm:$0xf]
    %v125 = vld [vmem:[#allocation2 + $0xc] sm:$0xf]
    %v130 = vunpack.c.l.b16 %v120
    %v131 = vunpack.c.l.b16 %v121
    %v132 = vunpack.c.l.b16 %v122
    %v133 = vunpack.c.l.b16 %v123
    %v134 = vpack.c.b16 %v131, %v130
    %v135 = vpack.c.b16 %v133, %v132
    %v138 = vunpack.c.l.b16 %v124
    %v139 = vunpack.c.l.b16 %v125
    %v140 = vpack.c.b16 %v139, %v138
    %vm142 = vcmask 130048
    %v144 = vsel %vm142, %v134, 0
    %v147 = vsel %vm142, %v135, 0
    %149 = vmatpush.bf16.msra.mxu0 0
    %150 = vmatpush.bf16.msra.mxu0 0
    %151 = vmatpush.bf16.msra.mxu0 0
    %152 = vmatpush.bf16.msra.mxu0 0
    %153 = vmatpush.bf16.msra.mxu0 0
    %154 = vmatpush.bf16.msra.mxu0 0
    %155 = vmatpush.bf16.msra.mxu0 0
    %156 = vmatpush.bf16.msra.mxu0 %v140
    %157 = vmatmul.bf16.gmra.mxu0 %v144
    %v158 = vpop.f32.mrf.mxu0
    %v159 = vadd.f32 0.0, %v158
    %v160 = vpop.f32.mrf.mxu0
    %v161 = vadd.f32 0.0, %v160
    %162 = vmatmul.bf16.gmra.mxu0 %v147
    %v163 = vpop.f32.mrf.mxu0
    %v164 = vadd.f32 0.0, %v163
    %v165 = vpop.f32.mrf.mxu0
    %v166 = vadd.f32 0.0, %v165
    %167 = vdwg.mxu0
    %v168 = vld [vmem:[#allocation2] sm:$0x1]
    %vm169 = vcmask 15360
    %v171 = vsel %vm169, %v118, 0
    %v174 = vsel %vm169, %v119, 0
    %vm176 = vcmask 1040384
    %v178 = vsel %vm176, %v168, 0
    %180 = vmatpush.bf16.msra.mxu0 0
    %181 = vmatpush.bf16.msra.mxu0 0
    %182 = vmatpush.bf16.msra.mxu0 0
    %183 = vmatpush.bf16.msra.mxu0 0
    %184 = vmatpush.bf16.msra.mxu0 0
    %185 = vmatpush.bf16.msra.mxu0 0
    %186 = vmatpush.bf16.msra.mxu0 0
    %187 = vmatpush.bf16.msra.mxu0 %v178
    %188 = vmatmul.bf16.gmra.mxu0 %v171
    %v189 = vpop.f32.mrf.mxu0
    %v190 = vadd.f32 0.0, %v189
    %v191 = vpop.f32.mrf.mxu0
    %v192 = vadd.f32 0.0, %v191
    %193 = vmatmul.bf16.gmra.mxu0 %v174
    %v194 = vpop.f32.mrf.mxu0
    %v195 = vadd.f32 0.0, %v194
    %v196 = vpop.f32.mrf.mxu0
    %v197 = vadd.f32 0.0, %v196
    %198 = vdwg.mxu0
    %v203 = vrot.slane %v190, 7
    %v204 = vrot.slane %v192, 7
    %v205 = vsel %vm176, %v203, %v204
    %v206 = vrot.slane %v195, 7
    %v207 = vsel %vm176, %v204, %v206
    %v208 = vrot.slane %v197, 7
    %v209 = vsel %vm176, %v206, %v208
    %v214 = vsel %vm176, 0.0, %v203
    %vm215 = vcmask 1046528
    %v216 = vrot.slane %v190, 1
    %v217 = vrot.slane %v192, 1
    %v218 = vsel %vm215, %v216, %v217
    %v219 = vrot.slane %v195, 1
    %v220 = vsel %vm215, %v217, %v219
    %v221 = vrot.slane %v197, 1
    %v222 = vsel %vm215, %v219, %v221
    %v227 = vsel %vm215, %v221, 0.0
    %v228 = vlaneseq
    %v229 = vshrl.u32 %v228, 7
    %v230 = vadd.s32 %v229, 8
    %v231 = vadd.s32 %v229, 16
    %v232 = vadd.s32 %v229, 24
    %v233 = vand.u32 %v229, 15
    %v234 = vand.u32 %v230, 15
    %v235 = vand.u32 %v231, 15
    %v236 = vand.u32 %v232, 15
    %vm237 = vcmp.ne.s32.totalorder %v233, 0
    %vm238 = vcmp.ne.s32.totalorder %v234, 0
    %vm239 = vcmp.ne.s32.totalorder %v235, 0
    %vm240 = vcmp.ne.s32.totalorder %v236, 0
    %v241 = vsel %vm237, 1, 0
    %v242 = vsel %vm238, 1, 0
    %v243 = vsel %vm239, 1, 0
    %v244 = vsel %vm240, 1, 0
    %vm245 = vcmp.eq.s32.totalorder %v241, 1
    %vm246 = vcmp.eq.s32.totalorder %v242, 1
    %vm247 = vcmp.eq.s32.totalorder %v243, 1
    %vm248 = vcmp.eq.s32.totalorder %v244, 1
    %v249 = vsel %vm245, %v214, 0.0
    %v250 = vsel %vm246, %v205, 0.0
    %v251 = vsel %vm247, %v207, 0.0
    %v252 = vsel %vm248, %v209, 0.0
    %vm253 = vcmp.ne.s32.totalorder %v233, 15
    %vm254 = vcmp.ne.s32.totalorder %v234, 15
    %vm255 = vcmp.ne.s32.totalorder %v235, 15
    %vm256 = vcmp.ne.s32.totalorder %v236, 15
    %v257 = vsel %vm253, 1, 0
    %v258 = vsel %vm254, 1, 0
    %v259 = vsel %vm255, 1, 0
    %v260 = vsel %vm256, 1, 0
    %vm261 = vcmp.eq.s32.totalorder %v257, 1
    %vm262 = vcmp.eq.s32.totalorder %v258, 1
    %vm263 = vcmp.eq.s32.totalorder %v259, 1
    %vm264 = vcmp.eq.s32.totalorder %v260, 1
    %v265 = vsel %vm261, %v218, 0.0
    %v266 = vsel %vm262, %v220, 0.0
    %v267 = vsel %vm263, %v222, 0.0
    %v268 = vsel %vm264, %v227, 0.0
    %269 = vrot.lane.b32.xlu0 %v190, 120
    %v270 = vpop.permute.xlu0 %269
    %271 = vrot.lane.b32.xlu0 %v192, 120
    %v272 = vpop.permute.xlu0 %271
    %273 = vrot.lane.b32.xlu0 %v195, 120
    %v274 = vpop.permute.xlu0 %273
    %275 = vrot.lane.b32.xlu0 %v197, 120
    %v276 = vpop.permute.xlu0 %275
    %v281 = vadd.f32 %v249, %v270
    %v282 = vadd.f32 %v250, %v272
    %v283 = vadd.f32 %v251, %v274
    %v284 = vadd.f32 %v252, %v276
    %289 = vrot.lane.b32.xlu0 %v265, 112
    %v290 = vpop.permute.xlu0 %289
    %291 = vrot.lane.b32.xlu0 %v266, 112
    %v292 = vpop.permute.xlu0 %291
    %293 = vrot.lane.b32.xlu0 %v267, 112
    %v294 = vpop.permute.xlu0 %293
    %295 = vrot.lane.b32.xlu0 %v268, 112
    %v296 = vpop.permute.xlu0 %295
    %v301 = vadd.f32 %v281, %v290
    %v302 = vadd.f32 %v282, %v292
    %v303 = vadd.f32 %v283, %v294
    %v304 = vadd.f32 %v284, %v296
    %v305 = vld [vmem:[#allocation5] sm:$0x1]
    %v306 = vperm.slane %v305, 0
    %v307 = vadd.f32 %v301, %v306
    %v308 = vadd.f32 %v302, %v306
    %v309 = vadd.f32 %v303, %v306
    %v310 = vadd.f32 %v304, %v306
    %v311 = vadd.f32 %v307, %v159
    %v312 = vadd.f32 %v308, %v161
    %v313 = vadd.f32 %v309, %v164
    %v314 = vadd.f32 %v310, %v166
    %v315 = vmax.f32 %v311, 0.0
    %v316 = vmax.f32 %v312, 0.0
    %v317 = vmax.f32 %v313, 0.0
    %v318 = vmax.f32 %v314, 0.0
    %v319 = vpack.c.bf16 %v316, %v315
    %v320 = vpack.c.bf16 %v318, %v317
    %v321 = vld [vmem:[#allocation2 + $0x10] sm:$0xf]
    %vm322 = vcmask 64512
    %v324 = vsel %vm322, %v319, 0
    %v327 = vsel %vm322, %v320, 0
    %vm329 = vcmask 1043456
    %v331 = vsel %vm329, %v321, 0
    %333 = vmatpush.bf16.msra.mxu0 0
    %334 = vmatpush.bf16.msra.mxu0 0
    %335 = vmatpush.bf16.msra.mxu0 0
    %336 = vmatpush.bf16.msra.mxu0 0
    %337 = vmatpush.bf16.msra.mxu0 0
    %338 = vmatpush.bf16.msra.mxu0 0
    %339 = vmatpush.bf16.msra.mxu0 0
    %340 = vmatpush.bf16.msra.mxu0 %v331
    %341 = vmatmul.bf16.gmra.mxu0 %v324
    %v342 = vpop.f32.mrf.mxu0
    %v343 = vadd.f32 0.0, %v342
    %v344 = vpop.f32.mrf.mxu0
    %v345 = vadd.f32 0.0, %v344
    %346 = vmatmul.bf16.gmra.mxu0 %v327
    %v347 = vpop.f32.mrf.mxu0
    %v348 = vadd.f32 0.0, %v347
    %v349 = vpop.f32.mrf.mxu0
    %v350 = vadd.f32 0.0, %v349
    %351 = vdwg.mxu0
    %v356 = vrot.slane %v343, 7
    %v357 = vrot.slane %v345, 7
    %v358 = vsel %vm176, %v356, %v357
    %v359 = vrot.slane %v348, 7
    %v360 = vsel %vm176, %v357, %v359
    %v361 = vrot.slane %v350, 7
    %v362 = vsel %vm176, %v359, %v361
    %v367 = vsel %vm176, 0.0, %v356
    %v368 = vrot.slane %v343, 1
    %v369 = vrot.slane %v345, 1
    %v370 = vsel %vm215, %v368, %v369
    %v371 = vrot.slane %v348, 1
    %v372 = vsel %vm215, %v369, %v371
    %v373 = vrot.slane %v350, 1
    %v374 = vsel %vm215, %v371, %v373
    %v379 = vsel %vm215, %v373, 0.0
    %v380 = vsel %vm245, %v367, 0.0
    %v381 = vsel %vm246, %v358, 0.0
    %v382 = vsel %vm247, %v360, 0.0
    %v383 = vsel %vm248, %v362, 0.0
    %v384 = vsel %vm261, %v370, 0.0
    %v385 = vsel %vm262, %v372, 0.0
    %v386 = vsel %vm263, %v374, 0.0
    %v387 = vsel %vm264, %v379, 0.0
    %388 = vrot.lane.b32.xlu0 %v343, 120
    %v389 = vpop.permute.xlu0 %388
    %390 = vrot.lane.b32.xlu0 %v345, 120
    %v391 = vpop.permute.xlu0 %390
    %392 = vrot.lane.b32.xlu0 %v348, 120
    %v393 = vpop.permute.xlu0 %392
    %394 = vrot.lane.b32.xlu0 %v350, 120
    %v395 = vpop.permute.xlu0 %394
    %v400 = vadd.f32 %v380, %v389
    %v401 = vadd.f32 %v381, %v391
    %v402 = vadd.f32 %v382, %v393
    %v403 = vadd.f32 %v383, %v395
    %408 = vrot.lane.b32.xlu0 %v384, 112
    %v409 = vpop.permute.xlu0 %408
    %410 = vrot.lane.b32.xlu0 %v385, 112
    %v411 = vpop.permute.xlu0 %410
    %412 = vrot.lane.b32.xlu0 %v386, 112
    %v413 = vpop.permute.xlu0 %412
    %414 = vrot.lane.b32.xlu0 %v387, 112
    %v415 = vpop.permute.xlu0 %414
    %v420 = vadd.f32 %v400, %v409
    %v421 = vadd.f32 %v401, %v411
    %v422 = vadd.f32 %v402, %v413
    %v423 = vadd.f32 %v403, %v415
    %v424 = vld [vmem:[#allocation5 + $0x8] sm:$0x1]
    %v425 = vperm.slane %v424, 0
    %v426 = vadd.f32 %v420, %v425
    %v427 = vadd.f32 %v421, %v425
    %v428 = vadd.f32 %v422, %v425
    %v429 = vadd.f32 %v423, %v425
    %v430 = vmax.f32 %v426, 0.0
    %v431 = vmax.f32 %v427, 0.0
    %v432 = vmax.f32 %v428, 0.0
    %v433 = vmax.f32 %v429, 0.0
    %v434 = vpack.c.bf16 %v430, %v430
    %v435 = vpack.c.bf16 %v431, %v431
    %v436 = vpack.c.bf16 %v432, %v432
    %v437 = vpack.c.bf16 %v433, %v433
    %v442 = vrot.slane %v434, 3
    %v443 = vrot.slane %v435, 3
    %v444 = vrot.slane %v436, 3
    %v445 = vrot.slane %v437, 3
    %v448 = vsel %vm176, %v434, %v442
    %vm449 = vcmask 1041409
    %v450 = vsel %vm449, %v434, %v442
    %v452 = vrot.slane %v450, 1
    %vm453 = vcmask 1042434
    %v454 = vsel %vm453, %v434, %v442
    %v456 = vrot.slane %v454, 2
    %vm457 = vcmask 1043459
    %v458 = vsel %vm457, %v434, %v442
    %v460 = vrot.slane %v458, 3
    %v463 = vsel %vm176, %v435, %v443
    %v464 = vsel %vm449, %v435, %v443
    %v466 = vrot.slane %v464, 1
    %v467 = vsel %vm453, %v435, %v443
    %v469 = vrot.slane %v467, 2
    %v470 = vsel %vm457, %v435, %v443
    %v472 = vrot.slane %v470, 3
    %v475 = vsel %vm176, %v436, %v444
    %v476 = vsel %vm449, %v436, %v444
    %v478 = vrot.slane %v476, 1
    %v479 = vsel %vm453, %v436, %v444
    %v481 = vrot.slane %v479, 2
    %v482 = vsel %vm457, %v436, %v444
    %v484 = vrot.slane %v482, 3
    %v487 = vsel %vm176, %v437, %v445
    %v488 = vsel %vm449, %v437, %v445
    %v490 = vrot.slane %v488, 1
    %v491 = vsel %vm453, %v437, %v445
    %v493 = vrot.slane %v491, 2
    %v494 = vsel %vm457, %v437, %v445
    %v496 = vrot.slane %v494, 3
    %v513 = vunpack.c.l.bf16 %v448
    %v514 = vunpack.c.l.bf16 %v452
    %v515 = vunpack.c.l.bf16 %v456
    %v516 = vunpack.c.l.bf16 %v460
    %v517 = vunpack.c.l.bf16 %v463
    %v518 = vunpack.c.l.bf16 %v466
    %v519 = vunpack.c.l.bf16 %v469
    %v520 = vunpack.c.l.bf16 %v472
    %v521 = vunpack.c.l.bf16 %v475
    %v522 = vunpack.c.l.bf16 %v478
    %v523 = vunpack.c.l.bf16 %v481
    %v524 = vunpack.c.l.bf16 %v484
    %v525 = vunpack.c.l.bf16 %v487
    %v526 = vunpack.c.l.bf16 %v490
    %v527 = vunpack.c.l.bf16 %v493
    %v528 = vunpack.c.l.bf16 %v496
    %vm529 = vcmask 58368
    %v530 = vsel %vm529, %v513, -inf
    %v531 = vrot.slane %v530, 4
    %v532 = vmax.f32 %v530, %v531
    %v533 = vrot.slane %v532, 2
    %v534 = vmax.f32 %v532, %v533
    %v535 = vrot.slane %v534, 1
    %v536 = vmax.f32 %v534, %v535
    %v537 = vsel %vm529, %v514, -inf
    %v538 = vrot.slane %v537, 4
    %v539 = vmax.f32 %v537, %v538
    %v540 = vrot.slane %v539, 2
    %v541 = vmax.f32 %v539, %v540
    %v542 = vrot.slane %v541, 1
    %v543 = vmax.f32 %v541, %v542
    %v544 = vsel %vm529, %v515, -inf
    %v545 = vrot.slane %v544, 4
    %v546 = vmax.f32 %v544, %v545
    %v547 = vrot.slane %v546, 2
    %v548 = vmax.f32 %v546, %v547
    %v549 = vrot.slane %v548, 1
    %v550 = vmax.f32 %v548, %v549
    %v551 = vsel %vm529, %v516, -inf
    %v552 = vrot.slane %v551, 4
    %v553 = vmax.f32 %v551, %v552
    %v554 = vrot.slane %v553, 2
    %v555 = vmax.f32 %v553, %v554
    %v556 = vrot.slane %v555, 1
    %v557 = vmax.f32 %v555, %v556
    %v558 = vsel %vm529, %v517, -inf
    %v559 = vrot.slane %v558, 4
    %v560 = vmax.f32 %v558, %v559
    %v561 = vrot.slane %v560, 2
    %v562 = vmax.f32 %v560, %v561
    %v563 = vrot.slane %v562, 1
    %v564 = vmax.f32 %v562, %v563
    %v565 = vsel %vm529, %v518, -inf
    %v566 = vrot.slane %v565, 4
    %v567 = vmax.f32 %v565, %v566
    %v568 = vrot.slane %v567, 2
    %v569 = vmax.f32 %v567, %v568
    %v570 = vrot.slane %v569, 1
    %v571 = vmax.f32 %v569, %v570
    %v572 = vsel %vm529, %v519, -inf
    %v573 = vrot.slane %v572, 4
    %v574 = vmax.f32 %v572, %v573
    %v575 = vrot.slane %v574, 2
    %v576 = vmax.f32 %v574, %v575
    %v577 = vrot.slane %v576, 1
    %v578 = vmax.f32 %v576, %v577
    %v579 = vsel %vm529, %v520, -inf
    %v580 = vrot.slane %v579, 4
    %v581 = vmax.f32 %v579, %v580
    %v582 = vrot.slane %v581, 2
    %v583 = vmax.f32 %v581, %v582
    %v584 = vrot.slane %v583, 1
    %v585 = vmax.f32 %v583, %v584
    %v586 = vsel %vm529, %v521, -inf
    %v587 = vrot.slane %v586, 4
    %v588 = vmax.f32 %v586, %v587
    %v589 = vrot.slane %v588, 2
    %v590 = vmax.f32 %v588, %v589
    %v591 = vrot.slane %v590, 1
    %v592 = vmax.f32 %v590, %v591
    %v593 = vsel %vm529, %v522, -inf
    %v594 = vrot.slane %v593, 4
    %v595 = vmax.f32 %v593, %v594
    %v596 = vrot.slane %v595, 2
    %v597 = vmax.f32 %v595, %v596
    %v598 = vrot.slane %v597, 1
    %v599 = vmax.f32 %v597, %v598
    %v600 = vsel %vm529, %v523, -inf
    %v601 = vrot.slane %v600, 4
    %v602 = vmax.f32 %v600, %v601
    %v603 = vrot.slane %v602, 2
    %v604 = vmax.f32 %v602, %v603
    %v605 = vrot.slane %v604, 1
    %v606 = vmax.f32 %v604, %v605
    %v607 = vsel %vm529, %v524, -inf
    %v608 = vrot.slane %v607, 4
    %v609 = vmax.f32 %v607, %v608
    %v610 = vrot.slane %v609, 2
    %v611 = vmax.f32 %v609, %v610
    %v612 = vrot.slane %v611, 1
    %v613 = vmax.f32 %v611, %v612
    %v614 = vsel %vm529, %v525, -inf
    %v615 = vrot.slane %v614, 4
    %v616 = vmax.f32 %v614, %v615
    %v617 = vrot.slane %v616, 2
    %v618 = vmax.f32 %v616, %v617
    %v619 = vrot.slane %v618, 1
    %v620 = vmax.f32 %v618, %v619
    %v621 = vsel %vm529, %v526, -inf
    %v622 = vrot.slane %v621, 4
    %v623 = vmax.f32 %v621, %v622
    %v624 = vrot.slane %v623, 2
    %v625 = vmax.f32 %v623, %v624
    %v626 = vrot.slane %v625, 1
    %v627 = vmax.f32 %v625, %v626
    %v628 = vsel %vm529, %v527, -inf
    %v629 = vrot.slane %v628, 4
    %v630 = vmax.f32 %v628, %v629
    %v631 = vrot.slane %v630, 2
    %v632 = vmax.f32 %v630, %v631
    %v633 = vrot.slane %v632, 1
    %v634 = vmax.f32 %v632, %v633
    %v635 = vsel %vm529, %v528, -inf
    %v636 = vrot.slane %v635, 4
    %v637 = vmax.f32 %v635, %v636
    %v638 = vrot.slane %v637, 2
    %v639 = vmax.f32 %v637, %v638
    %v640 = vrot.slane %v639, 1
    %v641 = vmax.f32 %v639, %v640
    %v642 = vpack.c.bf16 %v536, %v536
    %v643 = vpack.c.bf16 %v543, %v543
    %v644 = vpack.c.bf16 %v550, %v550
    %v645 = vpack.c.bf16 %v557, %v557
    %v646 = vpack.c.bf16 %v564, %v564
    %v647 = vpack.c.bf16 %v571, %v571
    %v648 = vpack.c.bf16 %v578, %v578
    %v649 = vpack.c.bf16 %v585, %v585
    %v650 = vpack.c.bf16 %v592, %v592
    %v651 = vpack.c.bf16 %v599, %v599
    %v652 = vpack.c.bf16 %v606, %v606
    %v653 = vpack.c.bf16 %v613, %v613
    %v654 = vpack.c.bf16 %v620, %v620
    %v655 = vpack.c.bf16 %v627, %v627
    %v656 = vpack.c.bf16 %v634, %v634
    %v657 = vpack.c.bf16 %v641, %v641
    %v658 = vrot.slane %v120, 3
    %v659 = vrot.slane %v121, 3
    %v660 = vrot.slane %v122, 3
    %v661 = vrot.slane %v123, 3
    %v664 = vsel %vm176, %v120, %v658
    %v665 = vsel %vm449, %v120, %v658
    %v667 = vrot.slane %v665, 1
    %v668 = vsel %vm453, %v120, %v658
    %v670 = vrot.slane %v668, 2
    %v671 = vsel %vm457, %v120, %v658
    %v673 = vrot.slane %v671, 3
    %v676 = vsel %vm176, %v121, %v659
    %v677 = vsel %vm449, %v121, %v659
    %v679 = vrot.slane %v677, 1
    %v680 = vsel %vm453, %v121, %v659
    %v682 = vrot.slane %v680, 2
    %v683 = vsel %vm457, %v121, %v659
    %v685 = vrot.slane %v683, 3
    %v688 = vsel %vm176, %v122, %v660
    %v689 = vsel %vm449, %v122, %v660
    %v691 = vrot.slane %v689, 1
    %v692 = vsel %vm453, %v122, %v660
    %v694 = vrot.slane %v692, 2
    %v695 = vsel %vm457, %v122, %v660
    %v697 = vrot.slane %v695, 3
    %v700 = vsel %vm176, %v123, %v661
    %v701 = vsel %vm449, %v123, %v661
    %v703 = vrot.slane %v701, 1
    %v704 = vsel %vm453, %v123, %v661
    %v706 = vrot.slane %v704, 2
    %v707 = vsel %vm457, %v123, %v661
    %v709 = vrot.slane %v707, 3
    %v726 = vunpack.c.l.bf16 %v664
    %v727 = vunpack.c.l.bf16 %v667
    %v728 = vunpack.c.l.bf16 %v670
    %v729 = vunpack.c.l.bf16 %v673
    %v730 = vunpack.c.l.bf16 %v676
    %v731 = vunpack.c.l.bf16 %v679
    %v732 = vunpack.c.l.bf16 %v682
    %v733 = vunpack.c.l.bf16 %v685
    %v734 = vunpack.c.l.bf16 %v688
    %v735 = vunpack.c.l.bf16 %v691
    %v736 = vunpack.c.l.bf16 %v694
    %v737 = vunpack.c.l.bf16 %v697
    %v738 = vunpack.c.l.bf16 %v700
    %v739 = vunpack.c.l.bf16 %v703
    %v740 = vunpack.c.l.bf16 %v706
    %v741 = vunpack.c.l.bf16 %v709
    %vm742 = vcmask 123904
    %v743 = vsel %vm742, %v726, -inf
    %v744 = vrot.slane %v743, 4
    %v745 = vmax.f32 %v743, %v744
    %v746 = vrot.slane %v745, 2
    %v747 = vmax.f32 %v745, %v746
    %v748 = vrot.slane %v747, 1
    %v749 = vmax.f32 %v747, %v748
    %v750 = vsel %vm742, %v727, -inf
    %v751 = vrot.slane %v750, 4
    %v752 = vmax.f32 %v750, %v751
    %v753 = vrot.slane %v752, 2
    %v754 = vmax.f32 %v752, %v753
    %v755 = vrot.slane %v754, 1
    %v756 = vmax.f32 %v754, %v755
    %v757 = vsel %vm742, %v728, -inf
    %v758 = vrot.slane %v757, 4
    %v759 = vmax.f32 %v757, %v758
    %v760 = vrot.slane %v759, 2
    %v761 = vmax.f32 %v759, %v760
    %v762 = vrot.slane %v761, 1
    %v763 = vmax.f32 %v761, %v762
    %v764 = vsel %vm742, %v729, -inf
    %v765 = vrot.slane %v764, 4
    %v766 = vmax.f32 %v764, %v765
    %v767 = vrot.slane %v766, 2
    %v768 = vmax.f32 %v766, %v767
    %v769 = vrot.slane %v768, 1
    %v770 = vmax.f32 %v768, %v769
    %v771 = vsel %vm742, %v730, -inf
    %v772 = vrot.slane %v771, 4
    %v773 = vmax.f32 %v771, %v772
    %v774 = vrot.slane %v773, 2
    %v775 = vmax.f32 %v773, %v774
    %v776 = vrot.slane %v775, 1
    %v777 = vmax.f32 %v775, %v776
    %v778 = vsel %vm742, %v731, -inf
    %v779 = vrot.slane %v778, 4
    %v780 = vmax.f32 %v778, %v779
    %v781 = vrot.slane %v780, 2
    %v782 = vmax.f32 %v780, %v781
    %v783 = vrot.slane %v782, 1
    %v784 = vmax.f32 %v782, %v783
    %v785 = vsel %vm742, %v732, -inf
    %v786 = vrot.slane %v785, 4
    %v787 = vmax.f32 %v785, %v786
    %v788 = vrot.slane %v787, 2
    %v789 = vmax.f32 %v787, %v788
    %v790 = vrot.slane %v789, 1
    %v791 = vmax.f32 %v789, %v790
    %v792 = vsel %vm742, %v733, -inf
    %v793 = vrot.slane %v792, 4
    %v794 = vmax.f32 %v792, %v793
    %v795 = vrot.slane %v794, 2
    %v796 = vmax.f32 %v794, %v795
    %v797 = vrot.slane %v796, 1
    %v798 = vmax.f32 %v796, %v797
    %v799 = vsel %vm742, %v734, -inf
    %v800 = vrot.slane %v799, 4
    %v801 = vmax.f32 %v799, %v800
    %v802 = vrot.slane %v801, 2
    %v803 = vmax.f32 %v801, %v802
    %v804 = vrot.slane %v803, 1
    %v805 = vmax.f32 %v803, %v804
    %v806 = vsel %vm742, %v735, -inf
    %v807 = vrot.slane %v806, 4
    %v808 = vmax.f32 %v806, %v807
    %v809 = vrot.slane %v808, 2
    %v810 = vmax.f32 %v808, %v809
    %v811 = vrot.slane %v810, 1
    %v812 = vmax.f32 %v810, %v811
    %v813 = vsel %vm742, %v736, -inf
    %v814 = vrot.slane %v813, 4
    %v815 = vmax.f32 %v813, %v814
    %v816 = vrot.slane %v815, 2
    %v817 = vmax.f32 %v815, %v816
    %v818 = vrot.slane %v817, 1
    %v819 = vmax.f32 %v817, %v818
    %v820 = vsel %vm742, %v737, -inf
    %v821 = vrot.slane %v820, 4
    %v822 = vmax.f32 %v820, %v821
    %v823 = vrot.slane %v822, 2
    %v824 = vmax.f32 %v822, %v823
    %v825 = vrot.slane %v824, 1
    %v826 = vmax.f32 %v824, %v825
    %v827 = vsel %vm742, %v738, -inf
    %v828 = vrot.slane %v827, 4
    %v829 = vmax.f32 %v827, %v828
    %v830 = vrot.slane %v829, 2
    %v831 = vmax.f32 %v829, %v830
    %v832 = vrot.slane %v831, 1
    %v833 = vmax.f32 %v831, %v832
    %v834 = vsel %vm742, %v739, -inf
    %v835 = vrot.slane %v834, 4
    %v836 = vmax.f32 %v834, %v835
    %v837 = vrot.slane %v836, 2
    %v838 = vmax.f32 %v836, %v837
    %v839 = vrot.slane %v838, 1
    %v840 = vmax.f32 %v838, %v839
    %v841 = vsel %vm742, %v740, -inf
    %v842 = vrot.slane %v841, 4
    %v843 = vmax.f32 %v841, %v842
    %v844 = vrot.slane %v843, 2
    %v845 = vmax.f32 %v843, %v844
    %v846 = vrot.slane %v845, 1
    %v847 = vmax.f32 %v845, %v846
    %v848 = vsel %vm742, %v741, -inf
    %v849 = vrot.slane %v848, 4
    %v850 = vmax.f32 %v848, %v849
    %v851 = vrot.slane %v850, 2
    %v852 = vmax.f32 %v850, %v851
    %v853 = vrot.slane %v852, 1
    %v854 = vmax.f32 %v852, %v853
    %v855 = vpack.c.bf16 %v749, %v749
    %v856 = vpack.c.bf16 %v756, %v756
    %v857 = vpack.c.bf16 %v763, %v763
    %v858 = vpack.c.bf16 %v770, %v770
    %v859 = vpack.c.bf16 %v777, %v777
    %v860 = vpack.c.bf16 %v784, %v784
    %v861 = vpack.c.bf16 %v791, %v791
    %v862 = vpack.c.bf16 %v798, %v798
    %v863 = vpack.c.bf16 %v805, %v805
    %v864 = vpack.c.bf16 %v812, %v812
    %v865 = vpack.c.bf16 %v819, %v819
    %v866 = vpack.c.bf16 %v826, %v826
    %v867 = vpack.c.bf16 %v833, %v833
    %v868 = vpack.c.bf16 %v840, %v840
    %v869 = vpack.c.bf16 %v847, %v847
    %v870 = vpack.c.bf16 %v854, %v854
    %v871 = vld [vmem:[#allocation2 + $0x20] sm:$0xf]
    %v872 = vld [vmem:[#allocation2 + $0x24] sm:$0xf]
    %v889 = vperm.slane %v855, 0
    %v890 = vperm.slane %v856, 0
    %v891 = vperm.slane %v857, 0
    %v892 = vperm.slane %v858, 0
    %v893 = vperm.slane %v859, 0
    %v894 = vperm.slane %v860, 0
    %v895 = vperm.slane %v861, 0
    %v896 = vperm.slane %v862, 0
    %v897 = vperm.slane %v863, 0
    %v898 = vperm.slane %v864, 0
    %v899 = vperm.slane %v865, 0
    %v900 = vperm.slane %v866, 0
    %v901 = vperm.slane %v867, 0
    %v902 = vperm.slane %v868, 0
    %v903 = vperm.slane %v869, 0
    %v904 = vperm.slane %v870, 0
    %v905 = vunpack.c.l.b16 %v889
    %v906 = vunpack.c.l.b16 %v890
    %v907 = vunpack.c.l.b16 %v891
    %v908 = vunpack.c.l.b16 %v892
    %v909 = vunpack.c.l.b16 %v893
    %v910 = vunpack.c.l.b16 %v894
    %v911 = vunpack.c.l.b16 %v895
    %v912 = vunpack.c.l.b16 %v896
    %v913 = vunpack.c.l.b16 %v897
    %v914 = vunpack.c.l.b16 %v898
    %v915 = vunpack.c.l.b16 %v899
    %v916 = vunpack.c.l.b16 %v900
    %v917 = vunpack.c.l.b16 %v901
    %v918 = vunpack.c.l.b16 %v902
    %v919 = vunpack.c.l.b16 %v903
    %v920 = vunpack.c.l.b16 %v904
    %v921 = vsel %vm449, %v906, %v905
    %v922 = vsel %vm453, %v907, %v921
    %v923 = vsel %vm457, %v908, %v922
    %vm924 = vcmask 1044484
    %v925 = vsel %vm924, %v909, %v923
    %vm926 = vcmask 1045509
    %v927 = vsel %vm926, %v910, %v925
    %vm928 = vcmask 1046534
    %v929 = vsel %vm928, %v911, %v927
    %vm930 = vcmask 1047559
    %v931 = vsel %vm930, %v912, %v929
    %v932 = vsel %vm449, %v914, %v913
    %v933 = vsel %vm453, %v915, %v932
    %v934 = vsel %vm457, %v916, %v933
    %v935 = vsel %vm924, %v917, %v934
    %v936 = vsel %vm926, %v918, %v935
    %v937 = vsel %vm928, %v919, %v936
    %v938 = vsel %vm930, %v920, %v937
    %v939 = vpack.c.b16 %v938, %v931
    %v942 = vunpack.c.l.b16 %v871
    %v943 = vunpack.c.l.b16 %v872
    %v944 = vpack.c.b16 %v943, %v942
    %v947 = vsel %vm142, %v939, 0
    %949 = vmatpush.bf16.msra.mxu0 0
    %950 = vmatpush.bf16.msra.mxu0 0
    %951 = vmatpush.bf16.msra.mxu0 0
    %952 = vmatpush.bf16.msra.mxu0 0
    %953 = vmatpush.bf16.msra.mxu0 0
    %954 = vmatpush.bf16.msra.mxu0 0
    %955 = vmatpush.bf16.msra.mxu0 0
    %956 = vmatpush.bf16.msra.mxu0 %v944
    %957 = vmatmul.bf16.gmra.mxu0 %v947
    %v958 = vpop.f32.mrf.mxu0
    %v959 = vadd.f32 0.0, %v958
    %v960 = vpop.f32.mrf.mxu0
    %v961 = vadd.f32 0.0, %v960
    %962 = vdwg.mxu0
    %v963 = vld [vmem:[#allocation2 + $0x18] sm:$0xf]
    %v980 = vunpack.c.l.b16 %v642
    %v981 = vunpack.c.l.b16 %v643
    %v982 = vunpack.c.l.b16 %v644
    %v983 = vunpack.c.l.b16 %v645
    %v984 = vunpack.c.l.b16 %v646
    %v985 = vunpack.c.l.b16 %v647
    %v986 = vunpack.c.l.b16 %v648
    %v987 = vunpack.c.l.b16 %v649
    %v988 = vunpack.c.l.b16 %v650
    %v989 = vunpack.c.l.b16 %v651
    %v990 = vunpack.c.l.b16 %v652
    %v991 = vunpack.c.l.b16 %v653
    %v992 = vunpack.c.l.b16 %v654
    %v993 = vunpack.c.l.b16 %v655
    %v994 = vunpack.c.l.b16 %v656
    %v995 = vunpack.c.l.b16 %v657
    %v996 = vsel %vm449, %v981, %v980
    %v997 = vsel %vm453, %v982, %v996
    %v998 = vsel %vm457, %v983, %v997
    %v999 = vsel %vm924, %v984, %v998
    %v1000 = vsel %vm926, %v985, %v999
    %v1001 = vsel %vm928, %v986, %v1000
    %v1002 = vsel %vm930, %v987, %v1001
    %v1003 = vsel %vm449, %v989, %v988
    %v1004 = vsel %vm453, %v990, %v1003
    %v1005 = vsel %vm457, %v991, %v1004
    %v1006 = vsel %vm924, %v992, %v1005
    %v1007 = vsel %vm926, %v993, %v1006
    %v1008 = vsel %vm928, %v994, %v1007
    %v1009 = vsel %vm930, %v995, %v1008
    %v1010 = vpack.c.b16 %v1009, %v1002
    %v1012 = vsel %vm322, %v1010, 0
    %v1015 = vsel %vm329, %v963, 0
    %1017 = vmatpush.bf16.msra.mxu0 0
    %1018 = vmatpush.bf16.msra.mxu0 0
    %1019 = vmatpush.bf16.msra.mxu0 0
    %1020 = vmatpush.bf16.msra.mxu0 0
    %1021 = vmatpush.bf16.msra.mxu0 0
    %1022 = vmatpush.bf16.msra.mxu0 0
    %1023 = vmatpush.bf16.msra.mxu0 0
    %1024 = vmatpush.bf16.msra.mxu0 %v1015
    %1025 = vmatmul.bf16.gmra.mxu0 %v1012
    %v1026 = vpop.f32.mrf.mxu0
    %v1027 = vadd.f32 0.0, %v1026
    %v1028 = vpop.f32.mrf.mxu0
    %v1029 = vadd.f32 0.0, %v1028
    %1030 = vdwg.mxu0
    %v1033 = vrot.slane %v1027, 7
    %v1034 = vrot.slane %v1029, 7
    %v1035 = vsel %vm176, %v1033, %v1034
    %v1038 = vsel %vm176, 0.0, %v1033
    %v1039 = vrot.slane %v1027, 1
    %v1040 = vrot.slane %v1029, 1
    %v1041 = vsel %vm215, %v1039, %v1040
    %v1044 = vsel %vm215, %v1040, 0.0
    %v1045 = vand.u32 %v229, 7
    %v1046 = vand.u32 %v230, 7
    %vm1047 = vcmp.ne.s32.totalorder %v1045, 0
    %vm1048 = vcmp.ne.s32.totalorder %v1046, 0
    %v1049 = vsel %vm1047, 1, 0
    %v1050 = vsel %vm1048, 1, 0
    %vm1051 = vcmp.eq.s32.totalorder %v1049, 1
    %vm1052 = vcmp.eq.s32.totalorder %v1050, 1
    %v1053 = vsel %vm1051, %v1038, 0.0
    %v1054 = vsel %vm1052, %v1035, 0.0
    %vm1055 = vcmp.ne.s32.totalorder %v1045, 7
    %vm1056 = vcmp.ne.s32.totalorder %v1046, 7
    %v1057 = vsel %vm1055, 1, 0
    %v1058 = vsel %vm1056, 1, 0
    %vm1059 = vcmp.eq.s32.totalorder %v1057, 1
    %vm1060 = vcmp.eq.s32.totalorder %v1058, 1
    %v1061 = vsel %vm1059, %v1041, 0.0
    %v1062 = vsel %vm1060, %v1044, 0.0
    %1063 = vrot.lane.b32.xlu0 %v1027, 112
    %v1064 = vpop.permute.xlu0 %1063
    %1065 = vrot.lane.b32.xlu0 %v1029, 112
    %v1066 = vpop.permute.xlu0 %1065
    %v1069 = vadd.f32 %v1053, %v1064
    %v1070 = vadd.f32 %v1054, %v1066
    %1073 = vrot.lane.b32.xlu0 %v1061, 96
    %v1074 = vpop.permute.xlu0 %1073
    %1075 = vrot.lane.b32.xlu0 %v1062, 96
    %v1076 = vpop.permute.xlu0 %1075
    %v1079 = vadd.f32 %v1069, %v1074
    %v1080 = vadd.f32 %v1070, %v1076
    %v1081 = vld [vmem:[#allocation5 + $0x10] sm:$0x1]
    %v1082 = vperm.slane %v1081, 0
    %v1083 = vadd.f32 %v1079, %v1082
    %v1084 = vadd.f32 %v1080, %v1082
    %v1085 = vadd.f32 %v1083, %v959
    %v1086 = vadd.f32 %v1084, %v961
    %v1087 = vmax.f32 %v1085, 0.0
    %v1088 = vmax.f32 %v1086, 0.0
    %v1089 = vpack.c.bf16 %v1088, %v1087
    %v1090 = vld [vmem:[#allocation2 + $0x28] sm:$0xf]
    %v1091 = vld [vmem:[#allocation2 + $0x2c] sm:$0xf]
    %v1094 = vunpack.c.l.b16 %v1090
    %v1095 = vunpack.c.l.b16 %v1091
    %v1096 = vpack.c.b16 %v1095, %v1094
    %v1099 = vsel %vm142, %v1089, 0
    %1101 = vmatpush.bf16.msra.mxu0 0
    %1102 = vmatpush.bf16.msra.mxu0 0
    %1103 = vmatpush.bf16.msra.mxu0 0
    %1104 = vmatpush.bf16.msra.mxu0 0
    %1105 = vmatpush.bf16.msra.mxu0 0
    %1106 = vmatpush.bf16.msra.mxu0 0
    %1107 = vmatpush.bf16.msra.mxu0 0
    %1108 = vmatpush.bf16.msra.mxu0 %v1096
    %1109 = vmatmul.bf16.gmra.mxu0 %v1099
    %v1110 = vpop.f32.mrf.mxu0
    %v1111 = vadd.f32 0.0, %v1110
    %v1112 = vpop.f32.mrf.mxu0
    %v1113 = vadd.f32 0.0, %v1112
    %1114 = vdwg.mxu0
    %v1117 = vrot.slane %v1111, 7
    %v1118 = vrot.slane %v1113, 7
    %v1119 = vsel %vm176, %v1117, %v1118
    %v1122 = vsel %vm176, 0.0, %v1117
    %v1123 = vrot.slane %v1111, 1
    %v1124 = vrot.slane %v1113, 1
    %v1125 = vsel %vm215, %v1123, %v1124
    %v1128 = vsel %vm215, %v1124, 0.0
    %v1129 = vsel %vm1051, %v1122, 0.0
    %v1130 = vsel %vm1052, %v1119, 0.0
    %v1131 = vsel %vm1059, %v1125, 0.0
    %v1132 = vsel %vm1060, %v1128, 0.0
    %1133 = vrot.lane.b32.xlu0 %v1111, 112
    %v1134 = vpop.permute.xlu0 %1133
    %1135 = vrot.lane.b32.xlu0 %v1113, 112
    %v1136 = vpop.permute.xlu0 %1135
    %v1139 = vadd.f32 %v1129, %v1134
    %v1140 = vadd.f32 %v1130, %v1136
    %1143 = vrot.lane.b32.xlu0 %v1131, 96
    %v1144 = vpop.permute.xlu0 %1143
    %1145 = vrot.lane.b32.xlu0 %v1132, 96
    %v1146 = vpop.permute.xlu0 %1145
    %v1149 = vadd.f32 %v1139, %v1144
    %v1150 = vadd.f32 %v1140, %v1146
    %v1151 = vld [vmem:[#allocation5 + $0x18] sm:$0x1]
    %v1152 = vperm.slane %v1151, 0
    %v1153 = vadd.f32 %v1149, %v1152
    %v1154 = vadd.f32 %v1150, %v1152
    %v1155 = vmax.f32 %v1153, 0.0
    %v1156 = vmax.f32 %v1154, 0.0
    %v1157 = vpack.c.bf16 %v1155, %v1155
    %v1158 = vpack.c.bf16 %v1156, %v1156
    %v1161 = vrot.slane %v1157, 3
    %v1162 = vrot.slane %v1158, 3
    %v1165 = vsel %vm176, %v1157, %v1161
    %v1166 = vsel %vm449, %v1157, %v1161
    %v1168 = vrot.slane %v1166, 1
    %v1169 = vsel %vm453, %v1157, %v1161
    %v1171 = vrot.slane %v1169, 2
    %v1172 = vsel %vm457, %v1157, %v1161
    %v1174 = vrot.slane %v1172, 3
    %v1177 = vsel %vm176, %v1158, %v1162
    %v1178 = vsel %vm449, %v1158, %v1162
    %v1180 = vrot.slane %v1178, 1
    %v1181 = vsel %vm453, %v1158, %v1162
    %v1183 = vrot.slane %v1181, 2
    %v1184 = vsel %vm457, %v1158, %v1162
    %v1186 = vrot.slane %v1184, 3
    %v1195 = vunpack.c.l.bf16 %v1165
    %v1196 = vunpack.c.l.bf16 %v1168
    %v1197 = vunpack.c.l.bf16 %v1171
    %v1198 = vunpack.c.l.bf16 %v1174
    %v1199 = vunpack.c.l.bf16 %v1177
    %v1200 = vunpack.c.l.bf16 %v1180
    %v1201 = vunpack.c.l.bf16 %v1183
    %v1202 = vunpack.c.l.bf16 %v1186
    %v1203 = vsel %vm742, %v1195, -inf
    %v1204 = vrot.slane %v1203, 4
    %v1205 = vmax.f32 %v1203, %v1204
    %v1206 = vrot.slane %v1205, 2
    %v1207 = vmax.f32 %v1205, %v1206
    %v1208 = vrot.slane %v1207, 1
    %v1209 = vmax.f32 %v1207, %v1208
    %v1210 = vsel %vm742, %v1196, -inf
    %v1211 = vrot.slane %v1210, 4
    %v1212 = vmax.f32 %v1210, %v1211
    %v1213 = vrot.slane %v1212, 2
    %v1214 = vmax.f32 %v1212, %v1213
    %v1215 = vrot.slane %v1214, 1
    %v1216 = vmax.f32 %v1214, %v1215
    %v1217 = vsel %vm742, %v1197, -inf
    %v1218 = vrot.slane %v1217, 4
    %v1219 = vmax.f32 %v1217, %v1218
    %v1220 = vrot.slane %v1219, 2
    %v1221 = vmax.f32 %v1219, %v1220
    %v1222 = vrot.slane %v1221, 1
    %v1223 = vmax.f32 %v1221, %v1222
    %v1224 = vsel %vm742, %v1198, -inf
    %v1225 = vrot.slane %v1224, 4
    %v1226 = vmax.f32 %v1224, %v1225
    %v1227 = vrot.slane %v1226, 2
    %v1228 = vmax.f32 %v1226, %v1227
    %v1229 = vrot.slane %v1228, 1
    %v1230 = vmax.f32 %v1228, %v1229
    %v1231 = vsel %vm742, %v1199, -inf
    %v1232 = vrot.slane %v1231, 4
    %v1233 = vmax.f32 %v1231, %v1232
    %v1234 = vrot.slane %v1233, 2
    %v1235 = vmax.f32 %v1233, %v1234
    %v1236 = vrot.slane %v1235, 1
    %v1237 = vmax.f32 %v1235, %v1236
    %v1238 = vsel %vm742, %v1200, -inf
    %v1239 = vrot.slane %v1238, 4
    %v1240 = vmax.f32 %v1238, %v1239
    %v1241 = vrot.slane %v1240, 2
    %v1242 = vmax.f32 %v1240, %v1241
    %v1243 = vrot.slane %v1242, 1
    %v1244 = vmax.f32 %v1242, %v1243
    %v1245 = vsel %vm742, %v1201, -inf
    %v1246 = vrot.slane %v1245, 4
    %v1247 = vmax.f32 %v1245, %v1246
    %v1248 = vrot.slane %v1247, 2
    %v1249 = vmax.f32 %v1247, %v1248
    %v1250 = vrot.slane %v1249, 1
    %v1251 = vmax.f32 %v1249, %v1250
    %v1252 = vsel %vm742, %v1202, -inf
    %v1253 = vrot.slane %v1252, 4
    %v1254 = vmax.f32 %v1252, %v1253
    %v1255 = vrot.slane %v1254, 2
    %v1256 = vmax.f32 %v1254, %v1255
    %v1257 = vrot.slane %v1256, 1
    %v1258 = vmax.f32 %v1256, %v1257
    %v1259 = vpack.c.bf16 %v1209, %v1209
    %v1260 = vpack.c.bf16 %v1216, %v1216
    %v1261 = vpack.c.bf16 %v1223, %v1223
    %v1262 = vpack.c.bf16 %v1230, %v1230
    %v1263 = vpack.c.bf16 %v1237, %v1237
    %v1264 = vpack.c.bf16 %v1244, %v1244
    %v1265 = vpack.c.bf16 %v1251, %v1251
    %v1266 = vpack.c.bf16 %v1258, %v1258
    %v1267 = vunpack.c.l.bf16 %v855
    %v1268 = vunpack.c.l.bf16 %v856
    %v1269 = vunpack.c.l.bf16 %v857
    %v1270 = vunpack.c.l.bf16 %v858
    %v1271 = vunpack.c.l.bf16 %v859
    %v1272 = vunpack.c.l.bf16 %v860
    %v1273 = vunpack.c.l.bf16 %v861
    %v1274 = vunpack.c.l.bf16 %v862
    %v1275 = vunpack.c.l.bf16 %v863
    %v1276 = vunpack.c.l.bf16 %v864
    %v1277 = vunpack.c.l.bf16 %v865
    %v1278 = vunpack.c.l.bf16 %v866
    %v1279 = vunpack.c.l.bf16 %v867
    %v1280 = vunpack.c.l.bf16 %v868
    %v1281 = vunpack.c.l.bf16 %v869
    %v1282 = vunpack.c.l.bf16 %v870
    %v1283 = vsel %vm142, %v1267, -inf
    %v1284 = vsel %vm142, %v1268, -inf
    %v1285 = vmax.f32 %v1283, %v1284
    %v1286 = vsel %vm142, %v1269, -inf
    %v1287 = vsel %vm142, %v1270, -inf
    %v1288 = vmax.f32 %v1286, %v1287
    %v1289 = vsel %vm142, %v1271, -inf
    %v1290 = vsel %vm142, %v1272, -inf
    %v1291 = vmax.f32 %v1289, %v1290
    %v1292 = vsel %vm142, %v1273, -inf
    %v1293 = vsel %vm142, %v1274, -inf
    %v1294 = vmax.f32 %v1292, %v1293
    %v1295 = vsel %vm142, %v1275, -inf
    %v1296 = vsel %vm142, %v1276, -inf
    %v1297 = vmax.f32 %v1295, %v1296
    %v1298 = vsel %vm142, %v1277, -inf
    %v1299 = vsel %vm142, %v1278, -inf
    %v1300 = vmax.f32 %v1298, %v1299
    %v1301 = vsel %vm142, %v1279, -inf
    %v1302 = vsel %vm142, %v1280, -inf
    %v1303 = vmax.f32 %v1301, %v1302
    %v1304 = vsel %vm142, %v1281, -inf
    %v1305 = vsel %vm142, %v1282, -inf
    %v1306 = vmax.f32 %v1304, %v1305
    %v1307 = vpack.c.bf16 %v1285, %v1285
    %v1308 = vpack.c.bf16 %v1288, %v1288
    %v1309 = vpack.c.bf16 %v1291, %v1291
    %v1310 = vpack.c.bf16 %v1294, %v1294
    %v1311 = vpack.c.bf16 %v1297, %v1297
    %v1312 = vpack.c.bf16 %v1300, %v1300
    %v1313 = vpack.c.bf16 %v1303, %v1303
    %v1314 = vpack.c.bf16 %v1306, %v1306
    %v1315 = vld [vmem:[#allocation2 + $0x38] sm:$0xf]
    %v1316 = vld [vmem:[#allocation2 + $0x3c] sm:$0xf]
    %v1325 = vunpack.c.l.b16 %v1307
    %v1326 = vunpack.c.l.b16 %v1308
    %v1327 = vunpack.c.l.b16 %v1309
    %v1328 = vunpack.c.l.b16 %v1310
    %v1329 = vunpack.c.l.b16 %v1311
    %v1330 = vunpack.c.l.b16 %v1312
    %v1331 = vunpack.c.l.b16 %v1313
    %v1332 = vunpack.c.l.b16 %v1314
    %v1333 = vsel %vm449, %v1326, %v1325
    %v1334 = vsel %vm453, %v1327, %v1333
    %v1335 = vsel %vm457, %v1328, %v1334
    %v1336 = vsel %vm924, %v1329, %v1335
    %v1337 = vsel %vm926, %v1330, %v1336
    %v1338 = vsel %vm928, %v1331, %v1337
    %v1339 = vsel %vm930, %v1332, %v1338
    %v1340 = vpack.c.b16 %v1339, %v1339
    %v1343 = vunpack.c.l.b16 %v1315
    %v1344 = vunpack.c.l.b16 %v1316
    %v1345 = vpack.c.b16 %v1344, %v1343
    %v1348 = vsel %vm142, %v1340, 0
    %1350 = vmatpush.bf16.msra.mxu0 0
    %1351 = vmatpush.bf16.msra.mxu0 0
    %1352 = vmatpush.bf16.msra.mxu0 0
    %1353 = vmatpush.bf16.msra.mxu0 0
    %1354 = vmatpush.bf16.msra.mxu0 0
    %1355 = vmatpush.bf16.msra.mxu0 0
    %1356 = vmatpush.bf16.msra.mxu0 0
    %1357 = vmatpush.bf16.msra.mxu0 %v1345
    %1358 = vmatmul.bf16.gmra.mxu0 %v1348
    %v1359 = vpop.f32.mrf.mxu0
    %v1360 = vadd.f32 0.0, %v1359
    %v1361 = vpop.f32.mrf.mxu0
    %1362 = vdwg.mxu0
    %v1363 = vld [vmem:[#allocation2 + $0x30] sm:$0xf]
    %v1364 = vld [vmem:[#allocation2 + $0x34] sm:$0xf]
    %v1373 = vunpack.c.l.b16 %v1259
    %v1374 = vunpack.c.l.b16 %v1260
    %v1375 = vunpack.c.l.b16 %v1261
    %v1376 = vunpack.c.l.b16 %v1262
    %v1377 = vunpack.c.l.b16 %v1263
    %v1378 = vunpack.c.l.b16 %v1264
    %v1379 = vunpack.c.l.b16 %v1265
    %v1380 = vunpack.c.l.b16 %v1266
    %v1381 = vsel %vm449, %v1374, %v1373
    %v1382 = vsel %vm453, %v1375, %v1381
    %v1383 = vsel %vm457, %v1376, %v1382
    %v1384 = vsel %vm924, %v1377, %v1383
    %v1385 = vsel %vm926, %v1378, %v1384
    %v1386 = vsel %vm928, %v1379, %v1385
    %v1387 = vsel %vm930, %v1380, %v1386
    %v1388 = vpack.c.b16 %v1387, %v1387
    %v1391 = vunpack.c.l.b16 %v1363
    %v1392 = vunpack.c.l.b16 %v1364
    %v1393 = vpack.c.b16 %v1392, %v1391
    %v1396 = vsel %vm142, %v1388, 0
    %1398 = vmatpush.bf16.msra.mxu0 0
    %1399 = vmatpush.bf16.msra.mxu0 0
    %1400 = vmatpush.bf16.msra.mxu0 0
    %1401 = vmatpush.bf16.msra.mxu0 0
    %1402 = vmatpush.bf16.msra.mxu0 0
    %1403 = vmatpush.bf16.msra.mxu0 0
    %1404 = vmatpush.bf16.msra.mxu0 0
    %1405 = vmatpush.bf16.msra.mxu0 %v1393
    %1406 = vmatmul.bf16.gmra.mxu0 %v1396
    %v1407 = vpop.f32.mrf.mxu0
    %v1408 = vadd.f32 0.0, %v1407
    %v1409 = vpop.f32.mrf.mxu0
    %1410 = vdwg.mxu0
    %v1412 = vrot.slane %v1408, 7
    %v1414 = vsel %vm176, 0.0, %v1412
    %v1415 = vrot.slane %v1408, 1
    %v1417 = vsel %vm215, %v1415, 0.0
    %v1418 = vand.u32 %v229, 3
    %vm1419 = vcmp.ne.s32.totalorder %v1418, 0
    %v1420 = vsel %vm1419, 1, 0
    %vm1421 = vcmp.eq.s32.totalorder %v1420, 1
    %v1422 = vsel %vm1421, %v1414, 0.0
    %vm1423 = vcmp.ne.s32.totalorder %v1418, 3
    %v1424 = vsel %vm1423, 1, 0
    %vm1425 = vcmp.eq.s32.totalorder %v1424, 1
    %v1426 = vsel %vm1425, %v1417, 0.0
    %1427 = vrot.lane.b32.xlu0 %v1408, 96
    %v1428 = vpop.permute.xlu0 %1427
    %v1430 = vadd.f32 %v1422, %v1428
    %1432 = vrot.lane.b32.xlu0 %v1426, 64
    %v1433 = vpop.permute.xlu0 %1432
    %v1435 = vadd.f32 %v1430, %v1433
    %v1436 = vld [vmem:[#allocation5 + $0x20] sm:$0x1]
    %v1437 = vperm.slane %v1436, 0
    %v1438 = vadd.f32 %v1435, %v1437
    %v1439 = vadd.f32 %v1438, %v1360
    %v1440 = vmax.f32 %v1439, 0.0
    %v1441 = vpack.c.bf16 %v1440, %v1440
    %v1442 = vld [vmem:[#allocation2 + $0x40] sm:$0xf]
    %v1443 = vld [vmem:[#allocation2 + $0x44] sm:$0xf]
    %v1444 = vld [vmem:[#allocation2 + $0x48] sm:$0xf]
    %v1445 = vld [vmem:[#allocation2 + $0x4c] sm:$0xf]
    %v1450 = vunpack.c.l.b16 %v1442
    %v1451 = vunpack.c.l.b16 %v1443
    %v1452 = vunpack.c.l.b16 %v1444
    %v1453 = vunpack.c.l.b16 %v1445
    %v1454 = vpack.c.b16 %v1451, %v1450
    %v1455 = vpack.c.b16 %v1453, %v1452
    %vm1458 = vcmask 261120
    %v1460 = vsel %vm1458, %v1441, 0
    %1462 = vmatpush.bf16.msra.mxu0 0
    %1463 = vmatpush.bf16.msra.mxu0 0
    %1464 = vmatpush.bf16.msra.mxu0 0
    %1465 = vmatpush.bf16.msra.mxu0 0
    %1466 = vmatpush.bf16.msra.mxu0 0
    %1467 = vmatpush.bf16.msra.mxu0 0
    %1468 = vmatpush.bf16.msra.mxu0 %v1455
    %1469 = vmatpush.bf16.msra.mxu0 %v1454
    %1470 = vmatmul.bf16.gmra.mxu0 %v1460
    %v1471 = vpop.f32.mrf.mxu0
    %v1472 = vadd.f32 0.0, %v1471
    %v1473 = vpop.f32.mrf.mxu0
    %1474 = vdwg.mxu0
    %v1476 = vrot.slane %v1472, 7
    %v1478 = vsel %vm176, 0.0, %v1476
    %v1479 = vrot.slane %v1472, 1
    %v1481 = vsel %vm215, %v1479, 0.0
    %v1482 = vsel %vm1421, %v1478, 0.0
    %v1483 = vsel %vm1425, %v1481, 0.0
    %1484 = vrot.lane.b32.xlu0 %v1472, 96
    %v1485 = vpop.permute.xlu0 %1484
    %v1487 = vadd.f32 %v1482, %v1485
    %1489 = vrot.lane.b32.xlu0 %v1483, 64
    %v1490 = vpop.permute.xlu0 %1489
    %v1492 = vadd.f32 %v1487, %v1490
    %v1493 = vld [vmem:[#allocation5 + $0x28] sm:$0x1]
    %v1494 = vperm.slane %v1493, 0
    %v1495 = vadd.f32 %v1492, %v1494
    %v1496 = vmax.f32 %v1495, 0.0
    %v1497 = vpack.c.bf16 %v1496, %v1496
    %v1498 = vld [vmem:[#allocation2 + $0x50] sm:$0xf]
    %v1499 = vld [vmem:[#allocation2 + $0x54] sm:$0xf]
    %v1500 = vld [vmem:[#allocation2 + $0x58] sm:$0xf]
    %v1501 = vld [vmem:[#allocation2 + $0x5c] sm:$0xf]
    %v1506 = vunpack.c.l.b16 %v1498
    %v1507 = vunpack.c.l.b16 %v1499
    %v1508 = vunpack.c.l.b16 %v1500
    %v1509 = vunpack.c.l.b16 %v1501
    %v1510 = vpack.c.b16 %v1507, %v1506
    %v1511 = vpack.c.b16 %v1509, %v1508
    %v1515 = vsel %vm1458, %v1497, 0
    %1517 = vmatpush.bf16.msra.mxu0 0
    %1518 = vmatpush.bf16.msra.mxu0 0
    %1519 = vmatpush.bf16.msra.mxu0 0
    %1520 = vmatpush.bf16.msra.mxu0 0
    %1521 = vmatpush.bf16.msra.mxu0 0
    %1522 = vmatpush.bf16.msra.mxu0 0
    %1523 = vmatpush.bf16.msra.mxu0 %v1511
    %1524 = vmatpush.bf16.msra.mxu0 %v1510
    %1525 = vmatmul.bf16.gmra.mxu0 %v1515
    %v1526 = vpop.f32.mrf.mxu0
    %v1527 = vadd.f32 0.0, %v1526
    %v1528 = vpop.f32.mrf.mxu0
    %1529 = vdwg.mxu0
    %v1531 = vrot.slane %v1527, 1
    %v1532 = vrot.slane %v1527, 2
    %v1533 = vrot.slane %v1527, 3
    %v1534 = vrot.slane %v1527, 4
    %v1535 = vrot.slane %v1527, 5
    %v1536 = vrot.slane %v1527, 6
    %v1537 = vrot.slane %v1527, 7
    %v1545 = vperm.slane %v1527, 0
    %v1546 = vperm.slane %v1531, 0
    %v1547 = vperm.slane %v1532, 0
    %v1548 = vperm.slane %v1533, 0
    %v1549 = vperm.slane %v1534, 0
    %v1550 = vperm.slane %v1535, 0
    %v1551 = vperm.slane %v1536, 0
    %v1552 = vperm.slane %v1537, 0
    %1553 = vrot.lane.b32.xlu0 %v1545, 112
    %v1554 = vpop.permute.xlu0 %1553
    %1555 = vrot.lane.b32.xlu0 %v1546, 112
    %v1556 = vpop.permute.xlu0 %1555
    %1557 = vrot.lane.b32.xlu0 %v1547, 112
    %v1558 = vpop.permute.xlu0 %1557
    %1559 = vrot.lane.b32.xlu0 %v1548, 112
    %v1560 = vpop.permute.xlu0 %1559
    %1561 = vrot.lane.b32.xlu0 %v1549, 112
    %v1562 = vpop.permute.xlu0 %1561
    %1563 = vrot.lane.b32.xlu0 %v1550, 112
    %v1564 = vpop.permute.xlu0 %1563
    %1565 = vrot.lane.b32.xlu0 %v1551, 112
    %v1566 = vpop.permute.xlu0 %1565
    %1567 = vrot.lane.b32.xlu0 %v1552, 112
    %v1568 = vpop.permute.xlu0 %1567
    %v1577 = vsel %vm176, %v1527, %v1554
    %v1578 = vsel %vm176, %v1531, %v1556
    %v1579 = vsel %vm176, %v1532, %v1558
    %v1580 = vsel %vm176, %v1533, %v1560
    %v1581 = vsel %vm176, %v1534, %v1562
    %v1582 = vsel %vm176, %v1535, %v1564
    %v1583 = vsel %vm176, %v1536, %v1566
    %v1584 = vsel %vm176, %v1537, %v1568
    %v1585 = vld [vmem:[#allocation5 + $0x30] sm:$0x1]
    %v1586 = vperm.slane %v1585, 0
    %v1588 = vrot.slane %v1586, 2
    %v1589 = vrot.slane %v1586, 4
    %v1590 = vrot.slane %v1586, 6
    %v1594 = vadd.f32 %v1577, %v1586
    %v1595 = vadd.f32 %v1578, %v1588
    %v1596 = vadd.f32 %v1579, %v1589
    %v1597 = vadd.f32 %v1580, %v1590
    %v1598 = vadd.f32 %v1581, %v1586
    %v1599 = vadd.f32 %v1582, %v1588
    %v1600 = vadd.f32 %v1583, %v1589
    %v1601 = vadd.f32 %v1584, %v1590
    %1610 = vst [vmem:[#allocation1] ss:$4 sm:$0xff] %v1594
    %s1611 = scalar_lea.vmem [#allocation1], 1
    %1612 = vst [vmem:[%s1611] ss:$4 sm:$0xff] %v1595
    %s1613 = scalar_lea.vmem [#allocation1], 2
    %1614 = vst [vmem:[%s1613] ss:$4 sm:$0xff] %v1596
    %s1615 = scalar_lea.vmem [#allocation1], 3
    %1616 = vst [vmem:[%s1615] ss:$4 sm:$0xff] %v1597
    %s1617 = scalar_lea.vmem [#allocation1], 32
    %1618 = vst [vmem:[%s1617] ss:$4 sm:$0xff] %v1598
    %s1619 = scalar_lea.vmem [#allocation1], 33
    %1620 = vst [vmem:[%s1619] ss:$4 sm:$0xff] %v1599
    %s1621 = scalar_lea.vmem [#allocation1], 34
    %1622 = vst [vmem:[%s1621] ss:$4 sm:$0xff] %v1600
    %s1623 = scalar_lea.vmem [#allocation1], 35
    %1624 = vst [vmem:[%s1623] ss:$4 sm:$0xff] %v1601
    %v1625 = vld.sshfl [vmem:[#allocation1] sm:$0xff pattern:$0x73625140]
    %v1626 = vld.sshfl [vmem:[#allocation1 + $0x20] sm:$0xff pattern:$0x73625140]
    %v1629 = vpack.c.bf16 %v1626, %v1625
    %v1630 = vld [vmem:[#allocation2 + $0x70] sm:$0xf]
    %v1631 = vld [vmem:[#allocation2 + $0x74] sm:$0xf]
    %v1634 = vunpack.c.l.b16 %v1630
    %v1635 = vunpack.c.l.b16 %v1631
    %v1636 = vpack.c.b16 %v1635, %v1634
    %1638 = vmatpush.bf16.msra.mxu0 0
    %1639 = vmatpush.bf16.msra.mxu0 0
    %1640 = vmatpush.bf16.msra.mxu0 0
    %1641 = vmatpush.bf16.msra.mxu0 0
    %1642 = vmatpush.bf16.msra.mxu0 0
    %1643 = vmatpush.bf16.msra.mxu0 0
    %1644 = vmatpush.bf16.msra.mxu0 0
    %1645 = vmatpush.bf16.msra.mxu0 %v1636
    %1646 = vmatmul.bf16.gmra.mxu0 %v947
    %v1647 = vpop.f32.mrf.mxu0
    %v1648 = vadd.f32 0.0, %v1647
    %v1649 = vpop.f32.mrf.mxu0
    %v1650 = vadd.f32 0.0, %v1649
    %1651 = vdwg.mxu0
    %v1652 = vld [vmem:[#allocation2 + $0x60] sm:$0xf]
    %v1653 = vld [vmem:[#allocation2 + $0x64] sm:$0xf]
    %v1654 = vld [vmem:[#allocation2 + $0x68] sm:$0xf]
    %v1655 = vld [vmem:[#allocation2 + $0x6c] sm:$0xf]
    %v1656 = vunpack.c.l.b16 %v1157
    %v1657 = vunpack.c.l.b16 %v1158
    %v1658 = vpack.c.b16 %v1657, %v1656
    %v1661 = vunpack.c.l.b16 %v1654
    %v1662 = vunpack.c.l.b16 %v1655
    %v1663 = vpack.c.b16 %v1662, %v1661
    %v1666 = vsel %vm142, %v1658, 0
    %1668 = vmatpush.bf16.msra.mxu0 0
    %1669 = vmatpush.bf16.msra.mxu0 0
    %1670 = vmatpush.bf16.msra.mxu0 0
    %1671 = vmatpush.bf16.msra.mxu0 0
    %1672 = vmatpush.bf16.msra.mxu0 0
    %1673 = vmatpush.bf16.msra.mxu0 0
    %1674 = vmatpush.bf16.msra.mxu0 0
    %1675 = vmatpush.bf16.msra.mxu0 %v1663
    %1676 = vmatmul.bf16.gmra.mxu0 %v1666
    %v1677 = vpop.f32.mrf.mxu0
    %v1678 = vadd.f32 0.0, %v1677
    %v1679 = vpop.f32.mrf.mxu0
    %v1680 = vadd.f32 0.0, %v1679
    %1681 = vdwg.mxu0
    %v1684 = vunpack.c.l.b16 %v1652
    %v1685 = vunpack.c.l.b16 %v1653
    %v1686 = vpack.c.b16 %v1685, %v1684
    %v1689 = vsel %vm142, %v1629, 0
    %1691 = vmatpush.bf16.msra.mxu0 0
    %1692 = vmatpush.bf16.msra.mxu0 0
    %1693 = vmatpush.bf16.msra.mxu0 0
    %1694 = vmatpush.bf16.msra.mxu0 0
    %1695 = vmatpush.bf16.msra.mxu0 0
    %1696 = vmatpush.bf16.msra.mxu0 0
    %1697 = vmatpush.bf16.msra.mxu0 0
    %1698 = vmatpush.bf16.msra.mxu0 %v1686
    %1699 = vmatmul.bf16.gmra.mxu0 %v1689
    %v1700 = vpop.f32.mrf.mxu0
    %v1701 = vadd.f32 %v1678, %v1700
    %v1702 = vpop.f32.mrf.mxu0
    %v1703 = vadd.f32 %v1680, %v1702
    %1704 = vdwg.mxu0
    %v1707 = vrot.slane %v1701, 7
    %v1708 = vrot.slane %v1703, 7
    %v1709 = vsel %vm176, %v1707, %v1708
    %v1712 = vsel %vm176, 0.0, %v1707
    %v1713 = vrot.slane %v1701, 1
    %v1714 = vrot.slane %v1703, 1
    %v1715 = vsel %vm215, %v1713, %v1714
    %v1718 = vsel %vm215, %v1714, 0.0
    %v1719 = vsel %vm1051, %v1712, 0.0
    %v1720 = vsel %vm1052, %v1709, 0.0
    %v1721 = vsel %vm1059, %v1715, 0.0
    %v1722 = vsel %vm1060, %v1718, 0.0
    %1723 = vrot.lane.b32.xlu0 %v1701, 112
    %v1724 = vpop.permute.xlu0 %1723
    %1725 = vrot.lane.b32.xlu0 %v1703, 112
    %v1726 = vpop.permute.xlu0 %1725
    %v1729 = vadd.f32 %v1719, %v1724
    %v1730 = vadd.f32 %v1720, %v1726
    %1733 = vrot.lane.b32.xlu0 %v1721, 96
    %v1734 = vpop.permute.xlu0 %1733
    %1735 = vrot.lane.b32.xlu0 %v1722, 96
    %v1736 = vpop.permute.xlu0 %1735
    %v1739 = vadd.f32 %v1729, %v1734
    %v1740 = vadd.f32 %v1730, %v1736
    %v1741 = vld [vmem:[#allocation5 + $0x38] sm:$0x1]
    %v1742 = vperm.slane %v1741, 0
    %v1743 = vadd.f32 %v1739, %v1742
    %v1744 = vadd.f32 %v1740, %v1742
    %v1745 = vadd.f32 %v1743, %v1648
    %v1746 = vadd.f32 %v1744, %v1650
    %v1747 = vmax.f32 %v1745, 0.0
    %v1748 = vmax.f32 %v1746, 0.0
    %v1749 = vpack.c.bf16 %v1748, %v1747
    %v1750 = vld [vmem:[#allocation2 + $0x78] sm:$0xf]
    %v1751 = vld [vmem:[#allocation2 + $0x7c] sm:$0xf]
    %v1754 = vunpack.c.l.b16 %v1750
    %v1755 = vunpack.c.l.b16 %v1751
    %v1756 = vpack.c.b16 %v1755, %v1754
    %v1759 = vsel %vm142, %v1749, 0
    %1761 = vmatpush.bf16.msra.mxu0 0
    %1762 = vmatpush.bf16.msra.mxu0 0
    %1763 = vmatpush.bf16.msra.mxu0 0
    %1764 = vmatpush.bf16.msra.mxu0 0
    %1765 = vmatpush.bf16.msra.mxu0 0
    %1766 = vmatpush.bf16.msra.mxu0 0
    %1767 = vmatpush.bf16.msra.mxu0 0
    %1768 = vmatpush.bf16.msra.mxu0 %v1756
    %1769 = vmatmul.bf16.gmra.mxu0 %v1759
    %v1770 = vpop.f32.mrf.mxu0
    %v1771 = vadd.f32 0.0, %v1770
    %v1772 = vpop.f32.mrf.mxu0
    %v1773 = vadd.f32 0.0, %v1772
    %1774 = vdwg.mxu0
    %v1777 = vrot.slane %v1771, 7
    %v1778 = vrot.slane %v1773, 7
    %v1779 = vsel %vm176, %v1777, %v1778
    %v1782 = vsel %vm176, 0.0, %v1777
    %v1783 = vrot.slane %v1771, 1
    %v1784 = vrot.slane %v1773, 1
    %v1785 = vsel %vm215, %v1783, %v1784
    %v1788 = vsel %vm215, %v1784, 0.0
    %v1789 = vsel %vm1051, %v1782, 0.0
    %v1790 = vsel %vm1052, %v1779, 0.0
    %v1791 = vsel %vm1059, %v1785, 0.0
    %v1792 = vsel %vm1060, %v1788, 0.0
    %1793 = vrot.lane.b32.xlu0 %v1771, 112
    %v1794 = vpop.permute.xlu0 %1793
    %1795 = vrot.lane.b32.xlu0 %v1773, 112
    %v1796 = vpop.permute.xlu0 %1795
    %v1799 = vadd.f32 %v1789, %v1794
    %v1800 = vadd.f32 %v1790, %v1796
    %1803 = vrot.lane.b32.xlu0 %v1791, 96
    %v1804 = vpop.permute.xlu0 %1803
    %1805 = vrot.lane.b32.xlu0 %v1792, 96
    %v1806 = vpop.permute.xlu0 %1805
    %v1809 = vadd.f32 %v1799, %v1804
    %v1810 = vadd.f32 %v1800, %v1806
    %v1811 = vld [vmem:[#allocation5 + $0x40] sm:$0x1]
    %v1812 = vperm.slane %v1811, 0
    %v1813 = vadd.f32 %v1809, %v1812
    %v1814 = vadd.f32 %v1810, %v1812
    %v1815 = vmax.f32 %v1813, 0.0
    %v1816 = vmax.f32 %v1814, 0.0
    %v1817 = vpack.c.bf16 %v1816, %v1815
    %v1818 = vld [vmem:[#allocation2 + $0x80] sm:$0xf]
    %v1819 = vld [vmem:[#allocation2 + $0x84] sm:$0xf]
    %v1822 = vunpack.c.l.b16 %v1818
    %v1823 = vunpack.c.l.b16 %v1819
    %v1824 = vpack.c.b16 %v1823, %v1822
    %v1827 = vsel %vm142, %v1817, 0
    %1829 = vmatpush.bf16.msra.mxu0 0
    %1830 = vmatpush.bf16.msra.mxu0 0
    %1831 = vmatpush.bf16.msra.mxu0 0
    %1832 = vmatpush.bf16.msra.mxu0 0
    %1833 = vmatpush.bf16.msra.mxu0 0
    %1834 = vmatpush.bf16.msra.mxu0 0
    %1835 = vmatpush.bf16.msra.mxu0 0
    %1836 = vmatpush.bf16.msra.mxu0 %v1824
    %1837 = vmatmul.bf16.gmra.mxu0 %v1827
    %v1838 = vpop.f32.mrf.mxu0
    %v1839 = vadd.f32 0.0, %v1838
    %v1840 = vpop.f32.mrf.mxu0
    %v1841 = vadd.f32 0.0, %v1840
    %1842 = vdwg.mxu0
    %v1845 = vrot.slane %v1839, 1
    %v1846 = vrot.slane %v1839, 2
    %v1847 = vrot.slane %v1839, 3
    %v1848 = vrot.slane %v1839, 4
    %v1849 = vrot.slane %v1839, 5
    %v1850 = vrot.slane %v1839, 6
    %v1851 = vrot.slane %v1839, 7
    %v1852 = vrot.slane %v1841, 1
    %v1853 = vrot.slane %v1841, 2
    %v1854 = vrot.slane %v1841, 3
    %v1855 = vrot.slane %v1841, 4
    %v1856 = vrot.slane %v1841, 5
    %v1857 = vrot.slane %v1841, 6
    %v1858 = vrot.slane %v1841, 7
    %v1873 = vperm.slane %v1839, 0
    %v1874 = vperm.slane %v1845, 0
    %v1875 = vperm.slane %v1846, 0
    %v1876 = vperm.slane %v1847, 0
    %v1877 = vperm.slane %v1848, 0
    %v1878 = vperm.slane %v1849, 0
    %v1879 = vperm.slane %v1850, 0
    %v1880 = vperm.slane %v1851, 0
    %v1881 = vperm.slane %v1841, 0
    %v1882 = vperm.slane %v1852, 0
    %v1883 = vperm.slane %v1853, 0
    %v1884 = vperm.slane %v1854, 0
    %v1885 = vperm.slane %v1855, 0
    %v1886 = vperm.slane %v1856, 0
    %v1887 = vperm.slane %v1857, 0
    %v1888 = vperm.slane %v1858, 0
    %1889 = vrot.lane.b32.xlu0 %v1873, 120
    %v1890 = vpop.permute.xlu0 %1889
    %1891 = vrot.lane.b32.xlu0 %v1874, 120
    %v1892 = vpop.permute.xlu0 %1891
    %1893 = vrot.lane.b32.xlu0 %v1875, 120
    %v1894 = vpop.permute.xlu0 %1893
    %1895 = vrot.lane.b32.xlu0 %v1876, 120
    %v1896 = vpop.permute.xlu0 %1895
    %1897 = vrot.lane.b32.xlu0 %v1877, 120
    %v1898 = vpop.permute.xlu0 %1897
    %1899 = vrot.lane.b32.xlu0 %v1878, 120
    %v1900 = vpop.permute.xlu0 %1899
    %1901 = vrot.lane.b32.xlu0 %v1879, 120
    %v1902 = vpop.permute.xlu0 %1901
    %1903 = vrot.lane.b32.xlu0 %v1880, 120
    %v1904 = vpop.permute.xlu0 %1903
    %1905 = vrot.lane.b32.xlu0 %v1881, 120
    %v1906 = vpop.permute.xlu0 %1905
    %1907 = vrot.lane.b32.xlu0 %v1882, 120
    %v1908 = vpop.permute.xlu0 %1907
    %1909 = vrot.lane.b32.xlu0 %v1883, 120
    %v1910 = vpop.permute.xlu0 %1909
    %1911 = vrot.lane.b32.xlu0 %v1884, 120
    %v1912 = vpop.permute.xlu0 %1911
    %1913 = vrot.lane.b32.xlu0 %v1885, 120
    %v1914 = vpop.permute.xlu0 %1913
    %1915 = vrot.lane.b32.xlu0 %v1886, 120
    %v1916 = vpop.permute.xlu0 %1915
    %1917 = vrot.lane.b32.xlu0 %v1887, 120
    %v1918 = vpop.permute.xlu0 %1917
    %1919 = vrot.lane.b32.xlu0 %v1888, 120
    %v1920 = vpop.permute.xlu0 %1919
    %v1937 = vsel %vm176, %v1839, %v1890
    %v1938 = vsel %vm176, %v1845, %v1892
    %v1939 = vsel %vm176, %v1846, %v1894
    %v1940 = vsel %vm176, %v1847, %v1896
    %v1941 = vsel %vm176, %v1848, %v1898
    %v1942 = vsel %vm176, %v1849, %v1900
    %v1943 = vsel %vm176, %v1850, %v1902
    %v1944 = vsel %vm176, %v1851, %v1904
    %v1945 = vsel %vm176, %v1841, %v1906
    %v1946 = vsel %vm176, %v1852, %v1908
    %v1947 = vsel %vm176, %v1853, %v1910
    %v1948 = vsel %vm176, %v1854, %v1912
    %v1949 = vsel %vm176, %v1855, %v1914
    %v1950 = vsel %vm176, %v1856, %v1916
    %v1951 = vsel %vm176, %v1857, %v1918
    %v1952 = vsel %vm176, %v1858, %v1920
    %v1953 = vld [vmem:[#allocation5 + $0x48] sm:$0x1]
    %v1954 = vperm.slane %v1953, 0
    %v1956 = vrot.slane %v1954, 2
    %v1957 = vrot.slane %v1954, 4
    %v1958 = vrot.slane %v1954, 6
    %v1962 = vadd.f32 %v1937, %v1954
    %v1963 = vadd.f32 %v1938, %v1956
    %v1964 = vadd.f32 %v1939, %v1957
    %v1965 = vadd.f32 %v1940, %v1958
    %v1966 = vadd.f32 %v1941, %v1954
    %v1967 = vadd.f32 %v1942, %v1956
    %v1968 = vadd.f32 %v1943, %v1957
    %v1969 = vadd.f32 %v1944, %v1958
    %v1970 = vadd.f32 %v1945, %v1954
    %v1971 = vadd.f32 %v1946, %v1956
    %v1972 = vadd.f32 %v1947, %v1957
    %v1973 = vadd.f32 %v1948, %v1958
    %v1974 = vadd.f32 %v1949, %v1954
    %v1975 = vadd.f32 %v1950, %v1956
    %v1976 = vadd.f32 %v1951, %v1957
    %v1977 = vadd.f32 %v1952, %v1958
    %1994 = vst [vmem:[#allocation1] ss:$4 sm:$0xff] %v1962
    %s1995 = scalar_lea.vmem [#allocation1], 1
    %1996 = vst [vmem:[%s1995] ss:$4 sm:$0xff] %v1963
    %s1997 = scalar_lea.vmem [#allocation1], 2
    %1998 = vst [vmem:[%s1997] ss:$4 sm:$0xff] %v1964
    %s1999 = scalar_lea.vmem [#allocation1], 3
    %2000 = vst [vmem:[%s1999] ss:$4 sm:$0xff] %v1965
    %s2001 = scalar_lea.vmem [#allocation1], 32
    %2002 = vst [vmem:[%s2001] ss:$4 sm:$0xff] %v1966
    %s2003 = scalar_lea.vmem [#allocation1], 33
    %2004 = vst [vmem:[%s2003] ss:$4 sm:$0xff] %v1967
    %s2005 = scalar_lea.vmem [#allocation1], 34
    %2006 = vst [vmem:[%s2005] ss:$4 sm:$0xff] %v1968
    %s2007 = scalar_lea.vmem [#allocation1], 35
    %2008 = vst [vmem:[%s2007] ss:$4 sm:$0xff] %v1969
    %v2009 = vld.sshfl [vmem:[#allocation1] sm:$0xff pattern:$0x73625140]
    %v2010 = vld.sshfl [vmem:[#allocation1 + $0x20] sm:$0xff pattern:$0x73625140]
    %2011 = vst [vmem:[#allocation1] ss:$4 sm:$0xff] %v1970
    %2012 = vst [vmem:[%s1995] ss:$4 sm:$0xff] %v1971
    %2013 = vst [vmem:[%s1997] ss:$4 sm:$0xff] %v1972
    %2014 = vst [vmem:[%s1999] ss:$4 sm:$0xff] %v1973
    %2015 = vst [vmem:[%s2001] ss:$4 sm:$0xff] %v1974
    %2016 = vst [vmem:[%s2003] ss:$4 sm:$0xff] %v1975
    %2017 = vst [vmem:[%s2005] ss:$4 sm:$0xff] %v1976
    %2018 = vst [vmem:[%s2007] ss:$4 sm:$0xff] %v1977
    %v2019 = vld.sshfl [vmem:[#allocation1] sm:$0xff pattern:$0x73625140]
    %v2020 = vld.sshfl [vmem:[#allocation1 + $0x20] sm:$0xff pattern:$0x73625140]
    %v2025 = vpack.c.bf16 %v2010, %v2009
    %v2026 = vpack.c.bf16 %v2020, %v2019
    %v2027 = vld [vmem:[#allocation2 + $0x98] sm:$0xf]
    %v2028 = vld [vmem:[#allocation2 + $0x9c] sm:$0xf]
    %v2031 = vunpack.c.l.b16 %v2027
    %v2032 = vunpack.c.l.b16 %v2028
    %v2033 = vpack.c.b16 %v2032, %v2031
    %2035 = vmatpush.bf16.msra.mxu0 0
    %2036 = vmatpush.bf16.msra.mxu0 0
    %2037 = vmatpush.bf16.msra.mxu0 0
    %2038 = vmatpush.bf16.msra.mxu0 0
    %2039 = vmatpush.bf16.msra.mxu0 0
    %2040 = vmatpush.bf16.msra.mxu0 0
    %2041 = vmatpush.bf16.msra.mxu0 0
    %2042 = vmatpush.bf16.msra.mxu0 %v2033
    %2043 = vmatmul.bf16.gmra.mxu0 %v144
    %v2044 = vpop.f32.mrf.mxu0
    %v2045 = vadd.f32 0.0, %v2044
    %v2046 = vpop.f32.mrf.mxu0
    %v2047 = vadd.f32 0.0, %v2046
    %2048 = vmatmul.bf16.gmra.mxu0 %v147
    %v2049 = vpop.f32.mrf.mxu0
    %v2050 = vadd.f32 0.0, %v2049
    %v2051 = vpop.f32.mrf.mxu0
    %v2052 = vadd.f32 0.0, %v2051
    %2053 = vdwg.mxu0
    %v2054 = vld [vmem:[#allocation2 + $0x88] sm:$0xf]
    %v2055 = vld [vmem:[#allocation2 + $0x90] sm:$0xf]
    %v2056 = vunpack.c.l.b16 %v434
    %v2057 = vunpack.c.l.b16 %v435
    %v2058 = vunpack.c.l.b16 %v436
    %v2059 = vunpack.c.l.b16 %v437
    %v2060 = vpack.c.b16 %v2057, %v2056
    %v2061 = vpack.c.b16 %v2059, %v2058
    %v2063 = vsel %vm322, %v2060, 0
    %v2066 = vsel %vm322, %v2061, 0
    %v2069 = vsel %vm329, %v2055, 0
    %2071 = vmatpush.bf16.msra.mxu0 0
    %2072 = vmatpush.bf16.msra.mxu0 0
    %2073 = vmatpush.bf16.msra.mxu0 0
    %2074 = vmatpush.bf16.msra.mxu0 0
    %2075 = vmatpush.bf16.msra.mxu0 0
    %2076 = vmatpush.bf16.msra.mxu0 0
    %2077 = vmatpush.bf16.msra.mxu0 0
    %2078 = vmatpush.bf16.msra.mxu0 %v2069
    %2079 = vmatmul.bf16.gmra.mxu0 %v2063
    %v2080 = vpop.f32.mrf.mxu0
    %v2081 = vadd.f32 0.0, %v2080
    %v2082 = vpop.f32.mrf.mxu0
    %v2083 = vadd.f32 0.0, %v2082
    %2084 = vmatmul.bf16.gmra.mxu0 %v2066
    %v2085 = vpop.f32.mrf.mxu0
    %v2086 = vadd.f32 0.0, %v2085
    %v2087 = vpop.f32.mrf.mxu0
    %v2088 = vadd.f32 0.0, %v2087
    %2089 = vdwg.mxu0
    %v2091 = vsel %vm322, %v2025, 0
    %v2094 = vsel %vm322, %v2026, 0
    %v2097 = vsel %vm329, %v2054, 0
    %2099 = vmatpush.bf16.msra.mxu0 0
    %2100 = vmatpush.bf16.msra.mxu0 0
    %2101 = vmatpush.bf16.msra.mxu0 0
    %2102 = vmatpush.bf16.msra.mxu0 0
    %2103 = vmatpush.bf16.msra.mxu0 0
    %2104 = vmatpush.bf16.msra.mxu0 0
    %2105 = vmatpush.bf16.msra.mxu0 0
    %2106 = vmatpush.bf16.msra.mxu0 %v2097
    %2107 = vmatmul.bf16.gmra.mxu0 %v2091
    %v2108 = vpop.f32.mrf.mxu0
    %v2109 = vadd.f32 %v2081, %v2108
    %v2110 = vpop.f32.mrf.mxu0
    %v2111 = vadd.f32 %v2083, %v2110
    %2112 = vmatmul.bf16.gmra.mxu0 %v2094
    %v2113 = vpop.f32.mrf.mxu0
    %v2114 = vadd.f32 %v2086, %v2113
    %v2115 = vpop.f32.mrf.mxu0
    %v2116 = vadd.f32 %v2088, %v2115
    %2117 = vdwg.mxu0
    %v2122 = vrot.slane %v2109, 7
    %v2123 = vrot.slane %v2111, 7
    %v2124 = vsel %vm176, %v2122, %v2123
    %v2125 = vrot.slane %v2114, 7
    %v2126 = vsel %vm176, %v2123, %v2125
    %v2127 = vrot.slane %v2116, 7
    %v2128 = vsel %vm176, %v2125, %v2127
    %v2133 = vsel %vm176, 0.0, %v2122
    %v2134 = vrot.slane %v2109, 1
    %v2135 = vrot.slane %v2111, 1
    %v2136 = vsel %vm215, %v2134, %v2135
    %v2137 = vrot.slane %v2114, 1
    %v2138 = vsel %vm215, %v2135, %v2137
    %v2139 = vrot.slane %v2116, 1
    %v2140 = vsel %vm215, %v2137, %v2139
    %v2145 = vsel %vm215, %v2139, 0.0
    %v2146 = vsel %vm245, %v2133, 0.0
    %v2147 = vsel %vm246, %v2124, 0.0
    %v2148 = vsel %vm247, %v2126, 0.0
    %v2149 = vsel %vm248, %v2128, 0.0
    %v2150 = vsel %vm261, %v2136, 0.0
    %v2151 = vsel %vm262, %v2138, 0.0
    %v2152 = vsel %vm263, %v2140, 0.0
    %v2153 = vsel %vm264, %v2145, 0.0
    %2154 = vrot.lane.b32.xlu0 %v2109, 120
    %v2155 = vpop.permute.xlu0 %2154
    %2156 = vrot.lane.b32.xlu0 %v2111, 120
    %v2157 = vpop.permute.xlu0 %2156
    %2158 = vrot.lane.b32.xlu0 %v2114, 120
    %v2159 = vpop.permute.xlu0 %2158
    %2160 = vrot.lane.b32.xlu0 %v2116, 120
    %v2161 = vpop.permute.xlu0 %2160
    %v2166 = vadd.f32 %v2146, %v2155
    %v2167 = vadd.f32 %v2147, %v2157
    %v2168 = vadd.f32 %v2148, %v2159
    %v2169 = vadd.f32 %v2149, %v2161
    %2174 = vrot.lane.b32.xlu0 %v2150, 112
    %v2175 = vpop.permute.xlu0 %2174
    %2176 = vrot.lane.b32.xlu0 %v2151, 112
    %v2177 = vpop.permute.xlu0 %2176
    %2178 = vrot.lane.b32.xlu0 %v2152, 112
    %v2179 = vpop.permute.xlu0 %2178
    %2180 = vrot.lane.b32.xlu0 %v2153, 112
    %v2181 = vpop.permute.xlu0 %2180
    %v2186 = vadd.f32 %v2166, %v2175
    %v2187 = vadd.f32 %v2167, %v2177
    %v2188 = vadd.f32 %v2168, %v2179
    %v2189 = vadd.f32 %v2169, %v2181
    %v2190 = vld [vmem:[#allocation5 + $0x50] sm:$0x1]
    %v2191 = vperm.slane %v2190, 0
    %v2192 = vadd.f32 %v2186, %v2191
    %v2193 = vadd.f32 %v2187, %v2191
    %v2194 = vadd.f32 %v2188, %v2191
    %v2195 = vadd.f32 %v2189, %v2191
    %v2196 = vadd.f32 %v2192, %v2045
    %v2197 = vadd.f32 %v2193, %v2047
    %v2198 = vadd.f32 %v2194, %v2050
    %v2199 = vadd.f32 %v2195, %v2052
    %v2200 = vmax.f32 %v2196, 0.0
    %v2201 = vmax.f32 %v2197, 0.0
    %v2202 = vmax.f32 %v2198, 0.0
    %v2203 = vmax.f32 %v2199, 0.0
    %v2204 = vpack.c.bf16 %v2201, %v2200
    %v2205 = vpack.c.bf16 %v2203, %v2202
    %v2206 = vld [vmem:[#allocation2 + $0xa0] sm:$0xf]
    %v2208 = vsel %vm322, %v2204, 0
    %v2211 = vsel %vm322, %v2205, 0
    %v2214 = vsel %vm329, %v2206, 0
    %2216 = vmatpush.bf16.msra.mxu0 0
    %2217 = vmatpush.bf16.msra.mxu0 0
    %2218 = vmatpush.bf16.msra.mxu0 0
    %2219 = vmatpush.bf16.msra.mxu0 0
    %2220 = vmatpush.bf16.msra.mxu0 0
    %2221 = vmatpush.bf16.msra.mxu0 0
    %2222 = vmatpush.bf16.msra.mxu0 0
    %2223 = vmatpush.bf16.msra.mxu0 %v2214
    %2224 = vmatmul.bf16.gmra.mxu0 %v2208
    %v2225 = vpop.f32.mrf.mxu0
    %v2226 = vadd.f32 0.0, %v2225
    %v2227 = vpop.f32.mrf.mxu0
    %v2228 = vadd.f32 0.0, %v2227
    %2229 = vmatmul.bf16.gmra.mxu0 %v2211
    %v2230 = vpop.f32.mrf.mxu0
    %v2231 = vadd.f32 0.0, %v2230
    %v2232 = vpop.f32.mrf.mxu0
    %v2233 = vadd.f32 0.0, %v2232
    %2234 = vdwg.mxu0
    %v2239 = vrot.slane %v2226, 7
    %v2240 = vrot.slane %v2228, 7
    %v2241 = vsel %vm176, %v2239, %v2240
    %v2242 = vrot.slane %v2231, 7
    %v2243 = vsel %vm176, %v2240, %v2242
    %v2244 = vrot.slane %v2233, 7
    %v2245 = vsel %vm176, %v2242, %v2244
    %v2250 = vsel %vm176, 0.0, %v2239
    %v2251 = vrot.slane %v2226, 1
    %v2252 = vrot.slane %v2228, 1
    %v2253 = vsel %vm215, %v2251, %v2252
    %v2254 = vrot.slane %v2231, 1
    %v2255 = vsel %vm215, %v2252, %v2254
    %v2256 = vrot.slane %v2233, 1
    %v2257 = vsel %vm215, %v2254, %v2256
    %v2262 = vsel %vm215, %v2256, 0.0
    %v2263 = vsel %vm245, %v2250, 0.0
    %v2264 = vsel %vm246, %v2241, 0.0
    %v2265 = vsel %vm247, %v2243, 0.0
    %v2266 = vsel %vm248, %v2245, 0.0
    %v2267 = vsel %vm261, %v2253, 0.0
    %v2268 = vsel %vm262, %v2255, 0.0
    %v2269 = vsel %vm263, %v2257, 0.0
    %v2270 = vsel %vm264, %v2262, 0.0
    %2271 = vrot.lane.b32.xlu0 %v2226, 120
    %v2272 = vpop.permute.xlu0 %2271
    %2273 = vrot.lane.b32.xlu0 %v2228, 120
    %v2274 = vpop.permute.xlu0 %2273
    %2275 = vrot.lane.b32.xlu0 %v2231, 120
    %v2276 = vpop.permute.xlu0 %2275
    %2277 = vrot.lane.b32.xlu0 %v2233, 120
    %v2278 = vpop.permute.xlu0 %2277
    %v2283 = vadd.f32 %v2263, %v2272
    %v2284 = vadd.f32 %v2264, %v2274
    %v2285 = vadd.f32 %v2265, %v2276
    %v2286 = vadd.f32 %v2266, %v2278
    %2291 = vrot.lane.b32.xlu0 %v2267, 112
    %v2292 = vpop.permute.xlu0 %2291
    %2293 = vrot.lane.b32.xlu0 %v2268, 112
    %v2294 = vpop.permute.xlu0 %2293
    %2295 = vrot.lane.b32.xlu0 %v2269, 112
    %v2296 = vpop.permute.xlu0 %2295
    %2297 = vrot.lane.b32.xlu0 %v2270, 112
    %v2298 = vpop.permute.xlu0 %2297
    %v2303 = vadd.f32 %v2283, %v2292
    %v2304 = vadd.f32 %v2284, %v2294
    %v2305 = vadd.f32 %v2285, %v2296
    %v2306 = vadd.f32 %v2286, %v2298
    %v2307 = vld [vmem:[#allocation5 + $0x58] sm:$0x1]
    %v2308 = vperm.slane %v2307, 0
    %v2309 = vadd.f32 %v2303, %v2308
    %v2310 = vadd.f32 %v2304, %v2308
    %v2311 = vadd.f32 %v2305, %v2308
    %v2312 = vadd.f32 %v2306, %v2308
    %v2313 = vmax.f32 %v2309, 0.0
    %v2314 = vmax.f32 %v2310, 0.0
    %v2315 = vmax.f32 %v2311, 0.0
    %v2316 = vmax.f32 %v2312, 0.0
    %v2317 = vpack.c.bf16 %v2314, %v2313
    %v2318 = vpack.c.bf16 %v2316, %v2315
    %v2319 = vld [vmem:[#allocation2 + $0xa8] sm:$0xf]
    %v2320 = vld [vmem:[#allocation5 + $0x60] sm:$0x1]
    %v2321 = vperm.slane %v2320, 0
    %v2323 = vsel %vm322, %v2317, 0
    %v2326 = vsel %vm322, %v2318, 0
    %v2329 = vsel %vm329, %v2319, 0
    %2331 = vmatpush.bf16.msra.mxu0 0
    %2332 = vmatpush.bf16.msra.mxu0 0
    %2333 = vmatpush.bf16.msra.mxu0 0
    %2334 = vmatpush.bf16.msra.mxu0 0
    %2335 = vmatpush.bf16.msra.mxu0 0
    %2336 = vmatpush.bf16.msra.mxu0 0
    %2337 = vmatpush.bf16.msra.mxu0 0
    %2338 = vmatpush.bf16.msra.mxu0 %v2329
    %2339 = vmatmul.bf16.gmra.mxu0 %v2323
    %v2340 = vpop.f32.mrf.mxu0
    %v2341 = vadd.f32 %v2321, %v2340
    %v2342 = vpop.f32.mrf.mxu0
    %v2343 = vadd.f32 %v2321, %v2342
    %2344 = vmatmul.bf16.gmra.mxu0 %v2326
    %v2345 = vpop.f32.mrf.mxu0
    %v2346 = vadd.f32 %v2321, %v2345
    %v2347 = vpop.f32.mrf.mxu0
    %v2348 = vadd.f32 %v2321, %v2347
    %2349 = vdwg.mxu0
    %2350 = vxpose.xlu0.b32.start [1/16] %v2341, 128
    %2351 = vxpose.xlu0.b32.cont [2/16] %v2343, 128
    %2352 = vxpose.xlu0.b32.cont [3/16] 0.0, 128
    %2353 = vxpose.xlu0.b32.cont [4/16] 0.0, 128
    %2354 = vxpose.xlu0.b32.cont [5/16] 0.0, 128
    %2355 = vxpose.xlu0.b32.cont [6/16] 0.0, 128
    %2356 = vxpose.xlu0.b32.cont [7/16] 0.0, 128
    %2357 = vxpose.xlu0.b32.cont [8/16] 0.0, 128
    %2358 = vxpose.xlu0.b32.cont [9/16] 0.0, 128
    %2359 = vxpose.xlu0.b32.cont [10/16] 0.0, 128
    %2360 = vxpose.xlu0.b32.cont [11/16] 0.0, 128
    %2361 = vxpose.xlu0.b32.cont [12/16] 0.0, 128
    %2362 = vxpose.xlu0.b32.cont [13/16] 0.0, 128
    %2363 = vxpose.xlu0.b32.cont [14/16] 0.0, 128
    %2364 = vxpose.xlu0.b32.cont [15/16] 0.0, 128
    %2365 = vxpose.xlu0.b32.end [16/16] 0.0, 128
    %v2366 = vpop.trf.xlu0
    %v2367 = vpop.trf.xlu0
    %v2368 = vpop.trf.xlu0
    %v2369 = vpop.trf.xlu0
    %v2370 = vpop.trf.xlu0
    %v2371 = vpop.trf.xlu0
    %v2372 = vpop.trf.xlu0
    %v2373 = vpop.trf.xlu0
    %v2374 = vpop.trf.xlu0
    %v2375 = vpop.trf.xlu0
    %v2376 = vpop.trf.xlu0
    %v2377 = vpop.trf.xlu0
    %v2378 = vpop.trf.xlu0
    %v2379 = vpop.trf.xlu0
    %v2380 = vpop.trf.xlu0
    %v2381 = vpop.trf.xlu0
    %2382 = vst.msk [vmem:[#allocation7] sm:$0x3] %vm742, %v2366
    %2383 = vxpose.xlu0.b32.start [1/16] %v2346, 128
    %2384 = vxpose.xlu0.b32.cont [2/16] %v2348, 128
    %2385 = vxpose.xlu0.b32.cont [3/16] 0.0, 128
    %2386 = vxpose.xlu0.b32.cont [4/16] 0.0, 128
    %2387 = vxpose.xlu0.b32.cont [5/16] 0.0, 128
    %2388 = vxpose.xlu0.b32.cont [6/16] 0.0, 128
    %2389 = vxpose.xlu0.b32.cont [7/16] 0.0, 128
    %2390 = vxpose.xlu0.b32.cont [8/16] 0.0, 128
    %2391 = vxpose.xlu0.b32.cont [9/16] 0.0, 128
    %2392 = vxpose.xlu0.b32.cont [10/16] 0.0, 128
    %2393 = vxpose.xlu0.b32.cont [11/16] 0.0, 128
    %2394 = vxpose.xlu0.b32.cont [12/16] 0.0, 128
    %2395 = vxpose.xlu0.b32.cont [13/16] 0.0, 128
    %2396 = vxpose.xlu0.b32.cont [14/16] 0.0, 128
    %2397 = vxpose.xlu0.b32.cont [15/16] 0.0, 128
    %2398 = vxpose.xlu0.b32.end [16/16] 0.0, 128
    %v2399 = vpop.trf.xlu0
    %v2400 = vpop.trf.xlu0
    %v2401 = vpop.trf.xlu0
    %v2402 = vpop.trf.xlu0
    %v2403 = vpop.trf.xlu0
    %v2404 = vpop.trf.xlu0
    %v2405 = vpop.trf.xlu0
    %v2406 = vpop.trf.xlu0
    %v2407 = vpop.trf.xlu0
    %v2408 = vpop.trf.xlu0
    %v2409 = vpop.trf.xlu0
    %v2410 = vpop.trf.xlu0
    %v2411 = vpop.trf.xlu0
    %v2412 = vpop.trf.xlu0
    %v2413 = vpop.trf.xlu0
    %v2414 = vpop.trf.xlu0
    %s2415 = scalar_lea.vmem [#allocation7], 2
    %2416 = vst.msk [vmem:[%s2415] sm:$0x3] %vm742, %v2399
    // Predicated region
    $region26: #{_lambda_.1} parent=1 // pred_check
      _
    $region27: #{_lambda_.1} parent=1 // pred_check_branch
      %2418 = sbr.rel (0) target = $region29
    $region28: #{_lambda_.1} parent=1 // pred_region
      %2420 = vsyncadd [#allocation4], 0
      %s2421 = sshll.u32 [#allocation7], 4
      %s2422 = int_to_ptr.vmem [resolvable:$true] %s2421
      %s2423 = sshll.u32 %s4, 4
      %s2424 = int_to_ptr.hbm [resolvable:$true] %s2423
      %2429 = dma.vmem_to_hbm [thread:$0]  %s2422, 64, %s2424, [#allocation4], 32, 32, 2
    $region29: #{_lambda_.1} parent=1 // pred_fallthru
      _
    // Predicated region
    $region30: #{_lambda_.1} parent=1 // pred_check
      _
    $region31: #{_lambda_.1} parent=1 // pred_check_branch
      %2431 = sbr.rel (0) target = $region33
    $region32: #{_lambda_.1} parent=1 // pred_region
      %2433 = dma.done [#allocation4], 64
    $region33: #{_lambda_.1} parent=1 // pred_fallthru
      _
    %2434 = vsyncpa [#allocation3], 1
    %2435 = vsyncpa [#allocation6], 1
    %2436 = vsyncpa [#allocation4], 1

</llo_original>
